<compile_context>
chip_gen: v5e
topology: v5e:2x2
jax: 0.10.0
libtpu: 0.0.40
codegen_flags: <defaults>
</compile_context>

<pallas_src>
import functools
import math

import jax
import jax.numpy as jnp
from jax.experimental import pallas as pl
from jax.experimental.pallas import tpu as pltpu


# ----------------------------------------------------------------------------
# Helpers that run inside kernels on VMEM tiles
# ----------------------------------------------------------------------------
def _layernorm(y, g, b, eps=1e-5):
    """y: (M, D) f32; g,b: (1, D)."""
    mu = jnp.mean(y, axis=-1, keepdims=True)
    var = jnp.mean((y - mu) ** 2, axis=-1, keepdims=True)
    return (y - mu) * jax.lax.rsqrt(var + eps) * g + b


def _mha_flat(xf, bt, seq, wqkv, bqkv, wo, bo, n_head):
    """Multi-head self-attention over `bt` independent sequences packed as rows.

    xf: (bt*seq, D) f32.  wqkv: (D, 3D) [bf16], bqkv: (1, 3D) f32,
    wo: (D, D) [bf16], bo: (1, D) f32.  Returns (bt*seq, D) f32.
    """
    M, D = xf.shape
    hd = D // n_head
    scale = 1.0 / math.sqrt(hd)

    # ONE full-width QKV projection on the MXU (M x D x 3D), f32 accumulate.
    qkv = jnp.dot(xf.astype(wqkv.dtype), wqkv,
                  preferred_element_type=jnp.float32) + bqkv            # (M, 3D) f32
    qkv_n = qkv.astype(wqkv.dtype)  # narrow copy feeding the batched einsums

    # Head split -> (bt*H, seq, hd) so scores/context are head-batched MXU matmuls.
    def heads(base):
        parts = []
        for b in range(bt):
            rows = qkv_n[b * seq:(b + 1) * seq]
            for h in range(n_head):
                parts.append(rows[:, base + h * hd: base + (h + 1) * hd])
        return jnp.stack(parts, axis=0)                                 # (bt*H, seq, hd)

    q, k, v = heads(0), heads(D), heads(2 * D)

    s = jnp.einsum("bqd,bkd->bqk", q, k,
                   preferred_element_type=jnp.float32) * scale          # (bt*H, S, S) f32
    s = s - jnp.max(s, axis=-1, keepdims=True)
    p = jnp.exp(s)
    p = p * pl.reciprocal(jnp.sum(p, axis=-1, keepdims=True), approx=True)
    ctx = jnp.einsum("bqk,bkd->bqd", p.astype(v.dtype), v,
                     preferred_element_type=jnp.float32)                # (bt*H, S, hd)
    # TODO(synk): for long sequences (S >= ~1K) replace the materialized (S,S)
    # scores with a KV-blocked online-softmax (flash) inner loop.

    # Reassemble (M, D) so the output projection is ONE (M,D)@(D,D) matmul.
    rows = []
    for b in range(bt):
        rows.append(jnp.concatenate(
            [ctx[b * n_head + h] for h in range(n_head)], axis=-1))     # (seq, D)
    ctx2 = jnp.concatenate(rows, axis=0)                                # (M, D) f32

    return jnp.dot(ctx2.astype(wo.dtype), wo,
                   preferred_element_type=jnp.float32) + bo             # (M, D) f32


def _pad_lanes(v, width=128):
    pad = width - v.shape[1]
    if pad > 0:
        v = jnp.concatenate([v, jnp.zeros((v.shape[0], pad), jnp.float32)], axis=1)
    return v


# ----------------------------------------------------------------------------
# Kernel 1: self-attention + residual + LayerNorm (fused)
#           + MoAE router (top-n gates) + aux-loss partial sums.
# ----------------------------------------------------------------------------
def _attn_ln_router_kernel(x_ref, wqkv_ref, bqkv_ref, wo_ref, bo_ref, wg_ref,
                           g_ref, beta_ref, o_ref, gates_ref, aux_ref,
                           *, n_head, top_n, n_experts):
    # TODO(synk): key_padding_mask / attn_mask are only supported as None.
    bt, seq, D = x_ref.shape
    M = bt * seq
    E = n_experts
    xf = x_ref[...].reshape(M, D).astype(jnp.float32)

    attn = _mha_flat(xf, bt, seq, wqkv_ref[...], bqkv_ref[...],
                     wo_ref[...], bo_ref[...], n_head)
    y = _layernorm(xf + attn, g_ref[...], beta_ref[...])   # dropout = identity (eval)
    o_ref[...] = y.reshape(bt, seq, D).astype(o_ref.dtype)

    # --- MoAE router on the normalized activations (still resident in VMEM) ---
    logits = jnp.dot(y, wg_ref[...], preferred_element_type=jnp.float32)   # (M, E)
    m = jnp.max(logits, axis=-1, keepdims=True)
    eg = jnp.exp(logits - m)
    denom = jnp.sum(eg, axis=-1, keepdims=True)
    gates = eg * pl.reciprocal(denom, approx=True)

    # Top-n selection (ties broken toward the lowest index, matching torch.topk).
    iota_e = jax.lax.broadcasted_iota(jnp.int32, (M, E), 1)
    sel_mask = jnp.zeros((M, E), jnp.float32)
    remaining = gates
    for _ in range(top_n):
        mx = jnp.max(remaining, axis=-1, keepdims=True)
        idx = jnp.min(jnp.where(remaining == mx, iota_e, E),
                      axis=-1, keepdims=True)
        onehot = (iota_e == idx).astype(jnp.float32)
        sel_mask = sel_mask + onehot
        remaining = jnp.where(onehot > 0, -jnp.inf, remaining)

    sel = gates * sel_mask
    sel = sel * pl.reciprocal(jnp.sum(sel, axis=-1, keepdims=True), approx=True)
    gates_ref[...] = sel.reshape(bt, seq, E)
    # TODO(synk): capacity-factor token dropping / straight-through dispatch are
    # not reproduced; this is dense top-n combine.

    # Aux-loss partial sums, stored as a lane-dense 128-wide slab:
    # row 0 = per-expert dispatch counts, row 1 = per-expert gate sums,
    # row 2 lane 0 = sum(logsumexp(logits)^2).  Finished in plain JAX.
    disp_sum = jnp.sum(sel_mask, axis=0, keepdims=True)                 # (1, E)
    gate_sum = jnp.sum(gates, axis=0, keepdims=True)                    # (1, E)
    lse = m + jnp.log(denom)                                            # (M, 1)
    z_sum = jnp.sum(lse * lse, axis=0, keepdims=True)                   # (1, 1)
    aux_ref[0] = jnp.concatenate([
        _pad_lanes(disp_sum),
        _pad_lanes(gate_sum),
        _pad_lanes(z_sum),
    ], axis=0)


def attn_ln_router_pallas(x, p, wg, ln_g, ln_b, n_head, top_n, batch_tile):
    B, S, D = x.shape
    E = wg.shape[1]
    assert E <= 128, "aux slab packs per-expert sums into 128 lanes"
    nb = B // batch_tile
    kernel = functools.partial(_attn_ln_router_kernel, n_head=n_head,
                               top_n=top_n, n_experts=E)
    return pl.pallas_call(
        kernel,
        out_shape=(
            jax.ShapeDtypeStruct((B, S, D), x.dtype),
            jax.ShapeDtypeStruct((B, S, E), jnp.float32),
            jax.ShapeDtypeStruct((nb, 3, 128), jnp.float32),
        ),
        grid_spec=pltpu.PrefetchScalarGridSpec(
            num_scalar_prefetch=0,
            grid=(nb,),
            in_specs=[
                pl.BlockSpec((batch_tile, S, D), lambda b: (b, 0, 0)),
                pl.BlockSpec((D, 3 * D), lambda b: (0, 0)),
                pl.BlockSpec((1, 3 * D), lambda b: (0, 0)),
                pl.BlockSpec((D, D), lambda b: (0, 0)),
                pl.BlockSpec((1, D), lambda b: (0, 0)),
                pl.BlockSpec((D, E), lambda b: (0, 0)),
                pl.BlockSpec((1, D), lambda b: (0, 0)),
                pl.BlockSpec((1, D), lambda b: (0, 0)),
            ],
            out_specs=[
                pl.BlockSpec((batch_tile, S, D), lambda b: (b, 0, 0)),
                pl.BlockSpec((batch_tile, S, E), lambda b: (b, 0, 0)),
                pl.BlockSpec((1, 3, 128), lambda b: (b, 0, 0)),
            ],
        ),
        compiler_params=pltpu.CompilerParams(dimension_semantics=("parallel",)),
    )(x, p["wqkv"], p["bqkv"], p["wo"], p["bo"], wg, ln_g, ln_b)


# ----------------------------------------------------------------------------
# Kernel 2: MoAE streamed-expert combine + residual + LayerNorm (fused).
# Grid = (batch_blocks, experts); expert axis is an "arbitrary" reduction into a
# VMEM accumulator, so only ONE expert's weights are resident (double-buffered)
# at a time — VMEM use is independent of E.  A scalar-prefetch flag per
# (batch block, expert) skips the MXU work for experts with zero dispatch.
# ----------------------------------------------------------------------------
def _moae_kernel(flags_ref, x_ref, gates_ref, wqkv_ref, bqkv_ref, wo_ref, bo_ref,
                 g_ref, beta_ref, o_ref, acc_ref, *, n_head, n_experts):
    b = pl.program_id(0)
    e = pl.program_id(1)
    bt, seq, D = x_ref.shape
    M = bt * seq
    E = n_experts
    xf = x_ref[...].reshape(M, D).astype(jnp.float32)

    @pl.when(e == 0)
    def _():
        acc_ref[...] = jnp.zeros_like(acc_ref)

    # Skip this expert entirely if no token in the block selected it (its gate
    # column is all zeros, so skipping is numerically exact).  Its weights are
    # still DMA'd by the BlockSpec pipeline.
    # TODO(synk): token-level dispatch (gather selected rows per expert) would
    # recover the remaining E/top_n dense-compute factor.
    @pl.when(flags_ref[b, e] != 0)
    def _():
        sel = gates_ref[...].reshape(M, E)                              # (M, E) f32
        lane = jax.lax.broadcasted_iota(jnp.int32, (M, E), 1)
        col = jnp.sum(sel * (lane == e).astype(jnp.float32),
                      axis=-1, keepdims=True)                           # (M, 1)
        expert_out = _mha_flat(xf, bt, seq, wqkv_ref[0], bqkv_ref[0],
                               wo_ref[0], bo_ref[0], n_head)
        acc_ref[...] = acc_ref[...] + col * expert_out

    @pl.when(e == E - 1)
    def _():
        # TODO(synk): moe_is_causal / key_padding_mask only supported as False/None.
        y = _layernorm(xf + acc_ref[...], g_ref[...], beta_ref[...])    # dropout = identity
        o_ref[...] = y.reshape(bt, seq, D).astype(o_ref.dtype)


def moae_ln_pallas(x, gates, flags, p, ln_g, ln_b, n_head_moe, batch_tile):
    B, S, D = x.shape
    E = p["wg"].shape[1]
    nb = B // batch_tile
    kernel = functools.partial(_moae_kernel, n_head=n_head_moe, n_experts=E)
    return pl.pallas_call(
        kernel,
        out_shape=jax.ShapeDtypeStruct((B, S, D), x.dtype),
        grid_spec=pltpu.PrefetchScalarGridSpec(
            num_scalar_prefetch=1,                     # flags -> SMEM
            grid=(nb, E),
            in_specs=[
                pl.BlockSpec((batch_tile, S, D), lambda b, e, fl: (b, 0, 0)),
                pl.BlockSpec((batch_tile, S, E), lambda b, e, fl: (b, 0, 0)),
                pl.BlockSpec((1, D, 3 * D), lambda b, e, fl: (e, 0, 0)),  # one expert / step
                pl.BlockSpec((1, 1, 3 * D), lambda b, e, fl: (e, 0, 0)),
                pl.BlockSpec((1, D, D), lambda b, e, fl: (e, 0, 0)),
                pl.BlockSpec((1, 1, D), lambda b, e, fl: (e, 0, 0)),
                pl.BlockSpec((1, D), lambda b, e, fl: (0, 0)),
                pl.BlockSpec((1, D), lambda b, e, fl: (0, 0)),
            ],
            out_specs=pl.BlockSpec((batch_tile, S, D), lambda b, e, fl: (b, 0, 0)),
            scratch_shapes=[
                pltpu.VMEM((batch_tile * S, D), jnp.float32),  # combined-expert accumulator
            ],
        ),
        compiler_params=pltpu.CompilerParams(
            dimension_semantics=("parallel", "arbitrary")),
    )(flags, x, gates, p["wqkv"], p["bqkv"], p["wo"], p["bo"], ln_g, ln_b)


# ----------------------------------------------------------------------------
# Tiny JAX-side finish of the aux losses (a few scalars per batch block)
# ----------------------------------------------------------------------------
def finish_aux_losses(aux_partials, n_experts, n_tokens,
                      balance_coef=0.01, z_coef=0.001):
    total = jnp.sum(aux_partials, axis=0)              # (3, 128)
    density = total[0, :n_experts] / n_tokens          # fraction of tokens per expert
    density_proxy = total[1, :n_experts] / n_tokens    # mean gate prob per expert
    balance_loss = n_experts * jnp.sum(density * density_proxy)
    z_loss = total[2, 0] / n_tokens                    # mean logsumexp(logits)^2
    return balance_coef * balance_loss + z_coef * z_loss


# ----------------------------------------------------------------------------
# Batch tiling: pack Bt*S rows per grid step (MXU M target), keep >=2 grid
# steps so both v7x TensorCores receive work via the "parallel" axis.
# ----------------------------------------------------------------------------
def _batch_tile(B, S, row_target=128, min_steps=2):
    best = 1
    for d in range(1, B + 1):
        if B % d != 0:
            continue
        if d * S > max(row_target, S):
            continue
        if B >= min_steps and B // d < min_steps:
            continue
        best = d
    return best


# ----------------------------------------------------------------------------
# Full block forward
# ----------------------------------------------------------------------------
def moae_transformer_block(x, params, *, n_head, n_head_moe, top_n):
    B, S, _ = x.shape
    bt = _batch_tile(B, S)
    nb = B // bt
    E = params["moae"]["wg"].shape[1]

    x1, gates, aux_partials = attn_ln_router_pallas(
        x, params["attn"], params["moae"]["wg"],
        params["ln1_g"], params["ln1_b"], n_head, top_n, bt)

    # Per-(batch-block, expert) dispatch flags (tiny reduction, stays jitted).
    flags = (gates.reshape(nb, bt * S, E) > 0).any(axis=1).astype(jnp.int32)

    x2 = moae_ln_pallas(x1, gates, flags, params["moae"],
                        params["ln2_g"], params["ln2_b"], n_head_moe, bt)

    total_aux_loss = finish_aux_losses(aux_partials, E, B * S)
    return x2, total_aux_loss


# ----------------------------------------------------------------------------
# Deterministic parameter init (matmul weights in bf16, f32 accumulation)
# ----------------------------------------------------------------------------
def init_params(key, d_model, n_experts, wdtype=jnp.bfloat16):
    D, E = d_model, n_experts
    ks = jax.random.split(key, 8)
    s = 0.05
    params = {
        "attn": {
            "wqkv": (s * jax.random.normal(ks[0], (D, 3 * D), jnp.float32)).astype(wdtype),
            "bqkv": s * jax.random.normal(ks[1], (1, 3 * D), jnp.float32),
            "wo":   (s * jax.random.normal(ks[2], (D, D), jnp.float32)).astype(wdtype),
            "bo":   s * jax.random.normal(ks[3], (1, D), jnp.float32),
        },
        "ln1_g": jnp.ones((1, D), jnp.float32),
        "ln1_b": jnp.zeros((1, D), jnp.float32),
        "ln2_g": jnp.ones((1, D), jnp.float32),
        "ln2_b": jnp.zeros((1, D), jnp.float32),
        "moae": {
            "wg":   s * jax.random.normal(ks[4], (D, E), jnp.float32),  # router (no bias)
            "wqkv": (s * jax.random.normal(ks[5], (E, D, 3 * D), jnp.float32)).astype(wdtype),
            "bqkv": jnp.zeros((E, 1, 3 * D), jnp.float32),
            "wo":   (s * jax.random.normal(ks[6], (E, D, D), jnp.float32)).astype(wdtype),
            "bo":   jnp.zeros((E, 1, D), jnp.float32),
        },
    }
    return params


if __name__ == "__main__":
    # Small shapes consistent with the module: batch=2, seq=8, d_model=32
    B, S, D = 2, 8, 32
    n_head, n_head_moe, experts, top_n = 4, 2, 4, 2

    key = jax.random.PRNGKey(0)
    kx, kp = jax.random.split(key)
    x = jax.random.normal(kx, (B, S, D), jnp.float32)
    params = init_params(kp, D, experts)

    fwd = jax.jit(functools.partial(moae_transformer_block,
                                    n_head=n_head, n_head_moe=n_head_moe,
                                    top_n=top_n))
    out, aux = fwd(x, params)
    jax.block_until_ready((out, aux))

    assert out.shape == (B, S, D)
    assert aux.shape == ()
    print("KERNEL_OK")
</pallas_src>

<mosaic_0001>
module attributes {stable_mosaic.version = 11 : i64} {
  func.func @_moae_kernel(%arg0: i32, %arg1: i32, %arg2: memref<2x4xi32, #tpu.memory_space<smem>>, %arg3: memref<1x8x32xf32, #tpu.memory_space<vmem>>, %arg4: memref<1x8x4xf32, #tpu.memory_space<vmem>>, %arg5: memref<1x32x96xbf16, #tpu.memory_space<vmem>>, %arg6: memref<1x1x96xf32, #tpu.memory_space<vmem>>, %arg7: memref<1x32x32xbf16, #tpu.memory_space<vmem>>, %arg8: memref<1x1x32xf32, #tpu.memory_space<vmem>>, %arg9: memref<1x32xf32, #tpu.memory_space<vmem>>, %arg10: memref<1x32xf32, #tpu.memory_space<vmem>>, %arg11: memref<1x8x32xf32, #tpu.memory_space<vmem>>, %arg12: memref<8x32xf32, #tpu.memory_space<vmem>>) attributes {dimension_semantics = [#tpu.dimension_semantics<parallel>, #tpu.dimension_semantics<arbitrary>], iteration_bounds = array<i64: 2, 4>, scalar_prefetch = 1 : i64, scratch_operands = 1 : i64, tpu.core_type = #tpu.core_type<tc>, window_params = [{transform_indices = @transform_0, window_bounds = array<i64: 1, 8, 32>}, {transform_indices = @transform_1, window_bounds = array<i64: 1, 8, 4>}, {transform_indices = @transform_2, window_bounds = array<i64: 1, 32, 96>}, {transform_indices = @transform_3, window_bounds = array<i64: 1, 1, 96>}, {transform_indices = @transform_4, window_bounds = array<i64: 1, 32, 32>}, {transform_indices = @transform_5, window_bounds = array<i64: 1, 1, 32>}, {pipeline_mode = #tpu.pipeline_mode<synchronous>, transform_indices = @transform_6, window_bounds = array<i64: 1, 32>}, {pipeline_mode = #tpu.pipeline_mode<synchronous>, transform_indices = @transform_7, window_bounds = array<i64: 1, 32>}, {transform_indices = @transform_8, window_bounds = array<i64: 1, 8, 32>}]} {
    %c0 = arith.constant 0 : index
    %c0_0 = arith.constant 0 : index
    %c0_1 = arith.constant 0 : index
    %0 = vector.load %arg3[%c0, %c0_0, %c0_1] : memref<1x8x32xf32, #tpu.memory_space<vmem>>, vector<1x8x32xf32>
    %1 = vector.shape_cast %0 : vector<1x8x32xf32> to vector<8x32xf32>
    %c0_i32 = arith.constant 0 : i32
    %2 = arith.cmpi eq, %arg1, %c0_i32 : i32
    %3 = arith.extui %2 : i1 to i32
    %c0_i32_2 = arith.constant 0 : i32
    %4 = arith.cmpi ne, %3, %c0_i32_2 : i32
    scf.if %4 {
      %cst = arith.constant 0.000000e+00 : f32
      %14 = vector.broadcast %cst : f32 to vector<8x32xf32>
      %c0_6 = arith.constant 0 : index
      %c0_7 = arith.constant 0 : index
      %15 = vector.load %arg12[%c0_6, %c0_7] : memref<8x32xf32, #tpu.memory_space<vmem>>, vector<8x32xf32>
      tpu.vector_store %arg12[%c0_6, %c0_7], %14 {strides = array<i32>} : memref<8x32xf32, #tpu.memory_space<vmem>>, vector<8x32xf32>,
    } else {
    }
    %5 = arith.index_cast %arg0 : i32 to index
    %6 = arith.index_cast %arg1 : i32 to index
    %7 = memref.load %arg2[%5, %6] : memref<2x4xi32, #tpu.memory_space<smem>>
    %c0_i32_3 = arith.constant 0 : i32
    %8 = arith.cmpi ne, %7, %c0_i32_3 : i32
    %9 = arith.extui %8 : i1 to i32
    %c0_i32_4 = arith.constant 0 : i32
    %10 = arith.cmpi ne, %9, %c0_i32_4 : i32
    scf.if %10 {
      %c0_6 = arith.constant 0 : index
      %c0_7 = arith.constant 0 : index
      %c0_8 = arith.constant 0 : index
      %14 = vector.load %arg4[%c0_6, %c0_7, %c0_8] : memref<1x8x4xf32, #tpu.memory_space<vmem>>, vector<1x8x4xf32>
      %15 = vector.shape_cast %14 : vector<1x8x4xf32> to vector<8x4xf32>
      %16 = tpu.iota {dimensions = array<i32: 1>} : vector<8x4xi32>
      %17 = vector.broadcast %arg1 : i32 to vector<8x4xi32>
      %18 = arith.cmpi eq, %16, %17 : vector<8x4xi32>
      %19 = arith.extui %18 : vector<8x4xi1> to vector<8x4xi32>
      %20 = arith.sitofp %19 : vector<8x4xi32> to vector<8x4xf32>
      %21 = arith.mulf %15, %20 : vector<8x4xf32>
      %cst = arith.constant dense<0.000000e+00> : vector<8xf32>
      %22 = vector.multi_reduction <add>, %21, %cst [1] : vector<8x4xf32> to vector<8xf32>
      %23 = vector.shape_cast %22 : vector<8xf32> to vector<8x1xf32>
      %c0_9 = arith.constant 0 : index
      %c0_10 = arith.constant 0 : index
      %c0_11 = arith.constant 0 : index
      %24 = vector.load %arg5[%c0_9, %c0_10, %c0_11] : memref<1x32x96xbf16, #tpu.memory_space<vmem>>, vector<1x32x96xbf16>
      %25 = vector.shape_cast %24 : vector<1x32x96xbf16> to vector<32x96xbf16>
      %c0_12 = arith.constant 0 : index
      %c0_13 = arith.constant 0 : index
      %c0_14 = arith.constant 0 : index
      %26 = vector.load %arg6[%c0_12, %c0_13, %c0_14] : memref<1x1x96xf32, #tpu.memory_space<vmem>>, vector<1x1x96xf32>
      %27 = vector.shape_cast %26 : vector<1x1x96xf32> to vector<1x96xf32>
      %c0_15 = arith.constant 0 : index
      %c0_16 = arith.constant 0 : index
      %c0_17 = arith.constant 0 : index
      %28 = vector.load %arg7[%c0_15, %c0_16, %c0_17] : memref<1x32x32xbf16, #tpu.memory_space<vmem>>, vector<1x32x32xbf16>
      %29 = vector.shape_cast %28 : vector<1x32x32xbf16> to vector<32x32xbf16>
      %c0_18 = arith.constant 0 : index
      %c0_19 = arith.constant 0 : index
      %c0_20 = arith.constant 0 : index
      %30 = vector.load %arg8[%c0_18, %c0_19, %c0_20] : memref<1x1x32xf32, #tpu.memory_space<vmem>>, vector<1x1x32xf32>
      %31 = vector.shape_cast %30 : vector<1x1x32xf32> to vector<1x32xf32>
      %32 = arith.truncf %1 : vector<8x32xf32> to vector<8x32xbf16>
      %cst_21 = arith.constant dense<0.000000e+00> : vector<8x96xf32>
      %33 = tpu.matmul %32, %25, %cst_21 {dimension_numbers = #tpu.dot_dimension_numbers<[1], [0], [0], [1], [0, 0, 1, 1], [], []>} : vector<8x32xbf16>, vector<32x96xbf16>, vector<8x96xf32> -> vector<8x96xf32>
      %34 = vector.broadcast %27 : vector<1x96xf32> to vector<8x96xf32>
      %35 = arith.addf %33, %34 : vector<8x96xf32>
      %36 = arith.truncf %35 : vector<8x96xf32> to vector<8x96xbf16>
      %37 = vector.extract_strided_slice %36 {offsets = [0, 0], sizes = [8, 16], strides = [1, 1]} : vector<8x96xbf16> to vector<8x16xbf16>
      %38 = vector.extract_strided_slice %36 {offsets = [0, 16], sizes = [8, 16], strides = [1, 1]} : vector<8x96xbf16> to vector<8x16xbf16>
      %39 = vector.shape_cast %37 : vector<8x16xbf16> to vector<1x8x16xbf16>
      %40 = vector.shape_cast %38 : vector<8x16xbf16> to vector<1x8x16xbf16>
      %41 = tpu.concatenate %39, %40 in 0 : vector<1x8x16xbf16>, vector<1x8x16xbf16> -> vector<2x8x16xbf16>
      %42 = vector.extract_strided_slice %36 {offsets = [0, 32], sizes = [8, 16], strides = [1, 1]} : vector<8x96xbf16> to vector<8x16xbf16>
      %43 = vector.extract_strided_slice %36 {offsets = [0, 48], sizes = [8, 16], strides = [1, 1]} : vector<8x96xbf16> to vector<8x16xbf16>
      %44 = vector.shape_cast %42 : vector<8x16xbf16> to vector<1x8x16xbf16>
      %45 = vector.shape_cast %43 : vector<8x16xbf16> to vector<1x8x16xbf16>
      %46 = tpu.concatenate %44, %45 in 0 : vector<1x8x16xbf16>, vector<1x8x16xbf16> -> vector<2x8x16xbf16>
      %47 = vector.extract_strided_slice %36 {offsets = [0, 64], sizes = [8, 16], strides = [1, 1]} : vector<8x96xbf16> to vector<8x16xbf16>
      %48 = vector.extract_strided_slice %36 {offsets = [0, 80], sizes = [8, 16], strides = [1, 1]} : vector<8x96xbf16> to vector<8x16xbf16>
      %49 = vector.shape_cast %47 : vector<8x16xbf16> to vector<1x8x16xbf16>
      %50 = vector.shape_cast %48 : vector<8x16xbf16> to vector<1x8x16xbf16>
      %51 = tpu.concatenate %49, %50 in 0 : vector<1x8x16xbf16>, vector<1x8x16xbf16> -> vector<2x8x16xbf16>
      "tpu.trace_start"() <{level = 10 : i32, message = "bqd,bkd->bqk"}> : () -> ()
      %cst_22 = arith.constant dense<0.000000e+00> : vector<2x8x8xf32>
      %52 = tpu.matmul %41, %46, %cst_22 {dimension_numbers = #tpu.dot_dimension_numbers<[2], [2], [1], [1], [0, 0, 0, 1, 1, 1], [0], [0]>} : vector<2x8x16xbf16>, vector<2x8x16xbf16>, vector<2x8x8xf32> -> vector<2x8x8xf32>
      "tpu.trace_stop"() : () -> ()
      %cst_23 = arith.constant 2.500000e-01 : f32
      %53 = vector.broadcast %cst_23 : f32 to vector<2x8x8xf32>
      %54 = arith.mulf %52, %53 : vector<2x8x8xf32>
      %cst_24 = arith.constant dense<0xFF800000> : vector<2x8xf32>
      %55 = vector.multi_reduction <maximumf>, %54, %cst_24 [2] : vector<2x8x8xf32> to vector<2x8xf32>
      %56 = vector.shape_cast %55 : vector<2x8xf32> to vector<2x8x1xf32>
      %57 = vector.broadcast %56 : vector<2x8x1xf32> to vector<2x8x8xf32>
      %58 = arith.subf %54, %57 : vector<2x8x8xf32>
      %59 = math.exp %58 : vector<2x8x8xf32>
      %cst_25 = arith.constant dense<0.000000e+00> : vector<2x8xf32>
      %60 = vector.multi_reduction <add>, %59, %cst_25 [2] : vector<2x8x8xf32> to vector<2x8xf32>
      %61 = vector.shape_cast %60 : vector<2x8xf32> to vector<2x8x1xf32>
      %62 = tpu.reciprocal %61 {approx = true} : vector<2x8x1xf32> -> vector<2x8x1xf32>
      %63 = vector.broadcast %62 : vector<2x8x1xf32> to vector<2x8x8xf32>
      %64 = arith.mulf %59, %63 : vector<2x8x8xf32>
      %65 = arith.truncf %64 : vector<2x8x8xf32> to vector<2x8x8xbf16>
      "tpu.trace_start"() <{level = 10 : i32, message = "bqk,bkd->bqd"}> : () -> ()
      %cst_26 = arith.constant dense<0.000000e+00> : vector<2x8x16xf32>
      %66 = tpu.matmul %65, %51, %cst_26 {dimension_numbers = #tpu.dot_dimension_numbers<[2], [1], [1], [2], [0, 0, 0, 1, 1, 2], [0], [0]>} : vector<2x8x8xbf16>, vector<2x8x16xbf16>, vector<2x8x16xf32> -> vector<2x8x16xf32>
      "tpu.trace_stop"() : () -> ()
      %67 = vector.extract_strided_slice %66 {offsets = [0, 0, 0], sizes = [1, 8, 16], strides = [1, 1, 1]} : vector<2x8x16xf32> to vector<1x8x16xf32>
      %68 = vector.shape_cast %67 : vector<1x8x16xf32> to vector<8x16xf32>
      %69 = vector.extract_strided_slice %66 {offsets = [1, 0, 0], sizes = [1, 8, 16], strides = [1, 1, 1]} : vector<2x8x16xf32> to vector<1x8x16xf32>
      %70 = vector.shape_cast %69 : vector<1x8x16xf32> to vector<8x16xf32>
      %71 = tpu.concatenate %68, %70 in 1 : vector<8x16xf32>, vector<8x16xf32> -> vector<8x32xf32>
      %72 = arith.truncf %71 : vector<8x32xf32> to vector<8x32xbf16>
      %cst_27 = arith.constant dense<0.000000e+00> : vector<8x32xf32>
      %73 = tpu.matmul %72, %29, %cst_27 {dimension_numbers = #tpu.dot_dimension_numbers<[1], [0], [0], [1], [0, 0, 1, 1], [], []>} : vector<8x32xbf16>, vector<32x32xbf16>, vector<8x32xf32> -> vector<8x32xf32>
      %74 = vector.broadcast %31 : vector<1x32xf32> to vector<8x32xf32>
      %75 = arith.addf %73, %74 : vector<8x32xf32>
      %c0_28 = arith.constant 0 : index
      %c0_29 = arith.constant 0 : index
      %76 = vector.load %arg12[%c0_28, %c0_29] : memref<8x32xf32, #tpu.memory_space<vmem>>, vector<8x32xf32>
      %77 = vector.broadcast %23 : vector<8x1xf32> to vector<8x32xf32>
      %78 = arith.mulf %77, %75 : vector<8x32xf32>
      %79 = arith.addf %76, %78 : vector<8x32xf32>
      %c0_30 = arith.constant 0 : index
      %c0_31 = arith.constant 0 : index
      %80 = vector.load %arg12[%c0_30, %c0_31] : memref<8x32xf32, #tpu.memory_space<vmem>>, vector<8x32xf32>
      tpu.vector_store %arg12[%c0_30, %c0_31], %79 {strides = array<i32>} : memref<8x32xf32, #tpu.memory_space<vmem>>, vector<8x32xf32>,
    } else {
    }
    %c3_i32 = arith.constant 3 : i32
    %11 = arith.cmpi eq, %arg1, %c3_i32 : i32
    %12 = arith.extui %11 : i1 to i32
    %c0_i32_5 = arith.constant 0 : i32
    %13 = arith.cmpi ne, %12, %c0_i32_5 : i32
    scf.if %13 {
      %c0_6 = arith.constant 0 : index
      %c0_7 = arith.constant 0 : index
      %14 = vector.load %arg12[%c0_6, %c0_7] : memref<8x32xf32, #tpu.memory_space<vmem>>, vector<8x32xf32>
      %15 = arith.addf %1, %14 : vector<8x32xf32>
      %c0_8 = arith.constant 0 : index
      %c0_9 = arith.constant 0 : index
      %16 = vector.load %arg9[%c0_8, %c0_9] : memref<1x32xf32, #tpu.memory_space<vmem>>, vector<1x32xf32>
      %c0_10 = arith.constant 0 : index
      %c0_11 = arith.constant 0 : index
      %17 = vector.load %arg10[%c0_10, %c0_11] : memref<1x32xf32, #tpu.memory_space<vmem>>, vector<1x32xf32>
      %cst = arith.constant dense<0.000000e+00> : vector<8xf32>
      %18 = vector.multi_reduction <add>, %15, %cst [1] : vector<8x32xf32> to vector<8xf32>
      %19 = vector.shape_cast %18 : vector<8xf32> to vector<8x1xf32>
      %cst_12 = arith.constant 3.200000e+01 : f32
      %20 = vector.broadcast %cst_12 : f32 to vector<8x1xf32>
      %21 = arith.divf %19, %20 : vector<8x1xf32>
      %22 = vector.broadcast %21 : vector<8x1xf32> to vector<8x32xf32>
      %23 = arith.subf %15, %22 : vector<8x32xf32>
      %24 = arith.mulf %23, %23 : vector<8x32xf32>
      %cst_13 = arith.constant dense<0.000000e+00> : vector<8xf32>
      %25 = vector.multi_reduction <add>, %24, %cst_13 [1] : vector<8x32xf32> to vector<8xf32>
      %26 = vector.shape_cast %25 : vector<8xf32> to vector<8x1xf32>
      %cst_14 = arith.constant 3.200000e+01 : f32
      %27 = vector.broadcast %cst_14 : f32 to vector<8x1xf32>
      %28 = arith.divf %26, %27 : vector<8x1xf32>
      %29 = vector.broadcast %21 : vector<8x1xf32> to vector<8x32xf32>
      %30 = arith.subf %15, %29 : vector<8x32xf32>
      %cst_15 = arith.constant 9.99999974E-6 : f32
      %31 = vector.broadcast %cst_15 : f32 to vector<8x1xf32>
      %32 = arith.addf %28, %31 : vector<8x1xf32>
      %33 = math.rsqrt %32 : vector<8x1xf32>
      %34 = vector.broadcast %33 : vector<8x1xf32> to vector<8x32xf32>
      %35 = arith.mulf %30, %34 : vector<8x32xf32>
      %36 = vector.broadcast %16 : vector<1x32xf32> to vector<8x32xf32>
      %37 = arith.mulf %35, %36 : vector<8x32xf32>
      %38 = vector.broadcast %17 : vector<1x32xf32> to vector<8x32xf32>
      %39 = arith.addf %37, %38 : vector<8x32xf32>
      %40 = vector.shape_cast %39 : vector<8x32xf32> to vector<1x8x32xf32>
      %c0_16 = arith.constant 0 : index
      %c0_17 = arith.constant 0 : index
      %c0_18 = arith.constant 0 : index
      %41 = vector.load %arg11[%c0_16, %c0_17, %c0_18] : memref<1x8x32xf32, #tpu.memory_space<vmem>>, vector<1x8x32xf32>
      tpu.vector_store %arg11[%c0_16, %c0_17, %c0_18], %40 {strides = array<i32>} : memref<1x8x32xf32, #tpu.memory_space<vmem>>, vector<1x8x32xf32>,
    } else {
    }
    return
  }
  func.func @transform_0(%arg0: i32, %arg1: i32, %arg2: memref<2x4xi32, #tpu.memory_space<smem>>) -> (i32, i32, i32) {
    %c0_i32 = arith.constant 0 : i32
    %c0_i32_0 = arith.constant 0 : i32
    %c0_i32_1 = arith.constant 0 : i32
    return %arg0, %c0_i32, %c0_i32_0 : i32, i32, i32
  }
  func.func @transform_1(%arg0: i32, %arg1: i32, %arg2: memref<2x4xi32, #tpu.memory_space<smem>>) -> (i32, i32, i32) {
    %c0_i32 = arith.constant 0 : i32
    %c0_i32_0 = arith.constant 0 : i32
    %c0_i32_1 = arith.constant 0 : i32
    return %arg0, %c0_i32, %c0_i32_0 : i32, i32, i32
  }
  func.func @transform_2(%arg0: i32, %arg1: i32, %arg2: memref<2x4xi32, #tpu.memory_space<smem>>) -> (i32, i32, i32) {
    %c0_i32 = arith.constant 0 : i32
    %c0_i32_0 = arith.constant 0 : i32
    %c0_i32_1 = arith.constant 0 : i32
    return %arg1, %c0_i32, %c0_i32_0 : i32, i32, i32
  }
  func.func @transform_3(%arg0: i32, %arg1: i32, %arg2: memref<2x4xi32, #tpu.memory_space<smem>>) -> (i32, i32, i32) {
    %c0_i32 = arith.constant 0 : i32
    %c0_i32_0 = arith.constant 0 : i32
    %c0_i32_1 = arith.constant 0 : i32
    return %arg1, %c0_i32, %c0_i32_0 : i32, i32, i32
  }
  func.func @transform_4(%arg0: i32, %arg1: i32, %arg2: memref<2x4xi32, #tpu.memory_space<smem>>) -> (i32, i32, i32) {
    %c0_i32 = arith.constant 0 : i32
    %c0_i32_0 = arith.constant 0 : i32
    %c0_i32_1 = arith.constant 0 : i32
    return %arg1, %c0_i32, %c0_i32_0 : i32, i32, i32
  }
  func.func @transform_5(%arg0: i32, %arg1: i32, %arg2: memref<2x4xi32, #tpu.memory_space<smem>>) -> (i32, i32, i32) {
    %c0_i32 = arith.constant 0 : i32
    %c0_i32_0 = arith.constant 0 : i32
    %c0_i32_1 = arith.constant 0 : i32
    return %arg1, %c0_i32, %c0_i32_0 : i32, i32, i32
  }
  func.func @transform_6(%arg0: i32, %arg1: i32, %arg2: memref<2x4xi32, #tpu.memory_space<smem>>) -> (i32, i32) {
    %c0_i32 = arith.constant 0 : i32
    %c0_i32_0 = arith.constant 0 : i32
    %c0_i32_1 = arith.constant 0 : i32
    return %c0_i32, %c0_i32_0 : i32, i32
  }
  func.func @transform_7(%arg0: i32, %arg1: i32, %arg2: memref<2x4xi32, #tpu.memory_space<smem>>) -> (i32, i32) {
    %c0_i32 = arith.constant 0 : i32
    %c0_i32_0 = arith.constant 0 : i32
    %c0_i32_1 = arith.constant 0 : i32
    return %c0_i32, %c0_i32_0 : i32, i32
  }
  func.func @transform_8(%arg0: i32, %arg1: i32, %arg2: memref<2x4xi32, #tpu.memory_space<smem>>) -> (i32, i32, i32) {
    %c0_i32 = arith.constant 0 : i32
    %c0_i32_0 = arith.constant 0 : i32
    %c0_i32_1 = arith.constant 0 : i32
    return %arg0, %c0_i32, %c0_i32_0 : i32, i32, i32
  }
}

module attributes {stable_mosaic.version = 11 : i64} {
  func.func @_attn_ln_router_kernel(%arg0: i32, %arg1: memref<1x8x32xf32, #tpu.memory_space<vmem>>, %arg2: memref<32x96xbf16, #tpu.memory_space<vmem>>, %arg3: memref<1x96xf32, #tpu.memory_space<vmem>>, %arg4: memref<32x32xbf16, #tpu.memory_space<vmem>>, %arg5: memref<1x32xf32, #tpu.memory_space<vmem>>, %arg6: memref<32x4xf32, #tpu.memory_space<vmem>>, %arg7: memref<1x32xf32, #tpu.memory_space<vmem>>, %arg8: memref<1x32xf32, #tpu.memory_space<vmem>>, %arg9: memref<1x8x32xf32, #tpu.memory_space<vmem>>, %arg10: memref<1x8x4xf32, #tpu.memory_space<vmem>>, %arg11: memref<1x3x128xf32, #tpu.memory_space<vmem>>) attributes {dimension_semantics = [#tpu.dimension_semantics<parallel>], iteration_bounds = array<i64: 2>, scalar_prefetch = 0 : i64, scratch_operands = 0 : i64, tpu.core_type = #tpu.core_type<tc>, window_params = [{transform_indices = @transform_0, window_bounds = array<i64: 1, 8, 32>}, {pipeline_mode = #tpu.pipeline_mode<synchronous>, transform_indices = @transform_1, window_bounds = array<i64: 32, 96>}, {pipeline_mode = #tpu.pipeline_mode<synchronous>, transform_indices = @transform_2, window_bounds = array<i64: 1, 96>}, {pipeline_mode = #tpu.pipeline_mode<synchronous>, transform_indices = @transform_3, window_bounds = array<i64: 32, 32>}, {pipeline_mode = #tpu.pipeline_mode<synchronous>, transform_indices = @transform_4, window_bounds = array<i64: 1, 32>}, {pipeline_mode = #tpu.pipeline_mode<synchronous>, transform_indices = @transform_5, window_bounds = array<i64: 32, 4>}, {pipeline_mode = #tpu.pipeline_mode<synchronous>, transform_indices = @transform_6, window_bounds = array<i64: 1, 32>}, {pipeline_mode = #tpu.pipeline_mode<synchronous>, transform_indices = @transform_7, window_bounds = array<i64: 1, 32>}, {transform_indices = @transform_8, window_bounds = array<i64: 1, 8, 32>}, {transform_indices = @transform_9, window_bounds = array<i64: 1, 8, 4>}, {transform_indices = @transform_10, window_bounds = array<i64: 1, 3, 128>}]} {
    %c0 = arith.constant 0 : index
    %c0_0 = arith.constant 0 : index
    %c0_1 = arith.constant 0 : index
    %0 = vector.load %arg1[%c0, %c0_0, %c0_1] : memref<1x8x32xf32, #tpu.memory_space<vmem>>, vector<1x8x32xf32>
    %1 = vector.shape_cast %0 : vector<1x8x32xf32> to vector<8x32xf32>
    %c0_2 = arith.constant 0 : index
    %c0_3 = arith.constant 0 : index
    %2 = vector.load %arg2[%c0_2, %c0_3] : memref<32x96xbf16, #tpu.memory_space<vmem>>, vector<32x96xbf16>
    %c0_4 = arith.constant 0 : index
    %c0_5 = arith.constant 0 : index
    %3 = vector.load %arg3[%c0_4, %c0_5] : memref<1x96xf32, #tpu.memory_space<vmem>>, vector<1x96xf32>
    %c0_6 = arith.constant 0 : index
    %c0_7 = arith.constant 0 : index
    %4 = vector.load %arg4[%c0_6, %c0_7] : memref<32x32xbf16, #tpu.memory_space<vmem>>, vector<32x32xbf16>
    %c0_8 = arith.constant 0 : index
    %c0_9 = arith.constant 0 : index
    %5 = vector.load %arg5[%c0_8, %c0_9] : memref<1x32xf32, #tpu.memory_space<vmem>>, vector<1x32xf32>
    %6 = arith.truncf %1 : vector<8x32xf32> to vector<8x32xbf16>
    %cst = arith.constant dense<0.000000e+00> : vector<8x96xf32>
    %7 = tpu.matmul %6, %2, %cst {dimension_numbers = #tpu.dot_dimension_numbers<[1], [0], [0], [1], [0, 0, 1, 1], [], []>} : vector<8x32xbf16>, vector<32x96xbf16>, vector<8x96xf32> -> vector<8x96xf32>
    %8 = vector.broadcast %3 : vector<1x96xf32> to vector<8x96xf32>
    %9 = arith.addf %7, %8 : vector<8x96xf32>
    %10 = arith.truncf %9 : vector<8x96xf32> to vector<8x96xbf16>
    %11 = vector.extract_strided_slice %10 {offsets = [0, 0], sizes = [8, 8], strides = [1, 1]} : vector<8x96xbf16> to vector<8x8xbf16>
    %12 = vector.extract_strided_slice %10 {offsets = [0, 8], sizes = [8, 8], strides = [1, 1]} : vector<8x96xbf16> to vector<8x8xbf16>
    %13 = vector.extract_strided_slice %10 {offsets = [0, 16], sizes = [8, 8], strides = [1, 1]} : vector<8x96xbf16> to vector<8x8xbf16>
    %14 = vector.extract_strided_slice %10 {offsets = [0, 24], sizes = [8, 8], strides = [1, 1]} : vector<8x96xbf16> to vector<8x8xbf16>
    %15 = vector.shape_cast %11 : vector<8x8xbf16> to vector<1x8x8xbf16>
    %16 = vector.shape_cast %12 : vector<8x8xbf16> to vector<1x8x8xbf16>
    %17 = vector.shape_cast %13 : vector<8x8xbf16> to vector<1x8x8xbf16>
    %18 = vector.shape_cast %14 : vector<8x8xbf16> to vector<1x8x8xbf16>
    %19 = tpu.concatenate %15, %16, %17, %18 in 0 : vector<1x8x8xbf16>, vector<1x8x8xbf16>, vector<1x8x8xbf16>, vector<1x8x8xbf16> -> vector<4x8x8xbf16>
    %20 = vector.extract_strided_slice %10 {offsets = [0, 32], sizes = [8, 8], strides = [1, 1]} : vector<8x96xbf16> to vector<8x8xbf16>
    %21 = vector.extract_strided_slice %10 {offsets = [0, 40], sizes = [8, 8], strides = [1, 1]} : vector<8x96xbf16> to vector<8x8xbf16>
    %22 = vector.extract_strided_slice %10 {offsets = [0, 48], sizes = [8, 8], strides = [1, 1]} : vector<8x96xbf16> to vector<8x8xbf16>
    %23 = vector.extract_strided_slice %10 {offsets = [0, 56], sizes = [8, 8], strides = [1, 1]} : vector<8x96xbf16> to vector<8x8xbf16>
    %24 = vector.shape_cast %20 : vector<8x8xbf16> to vector<1x8x8xbf16>
    %25 = vector.shape_cast %21 : vector<8x8xbf16> to vector<1x8x8xbf16>
    %26 = vector.shape_cast %22 : vector<8x8xbf16> to vector<1x8x8xbf16>
    %27 = vector.shape_cast %23 : vector<8x8xbf16> to vector<1x8x8xbf16>
    %28 = tpu.concatenate %24, %25, %26, %27 in 0 : vector<1x8x8xbf16>, vector<1x8x8xbf16>, vector<1x8x8xbf16>, vector<1x8x8xbf16> -> vector<4x8x8xbf16>
    %29 = vector.extract_strided_slice %10 {offsets = [0, 64], sizes = [8, 8], strides = [1, 1]} : vector<8x96xbf16> to vector<8x8xbf16>
    %30 = vector.extract_strided_slice %10 {offsets = [0, 72], sizes = [8, 8], strides = [1, 1]} : vector<8x96xbf16> to vector<8x8xbf16>
    %31 = vector.extract_strided_slice %10 {offsets = [0, 80], sizes = [8, 8], strides = [1, 1]} : vector<8x96xbf16> to vector<8x8xbf16>
    %32 = vector.extract_strided_slice %10 {offsets = [0, 88], sizes = [8, 8], strides = [1, 1]} : vector<8x96xbf16> to vector<8x8xbf16>
    %33 = vector.shape_cast %29 : vector<8x8xbf16> to vector<1x8x8xbf16>
    %34 = vector.shape_cast %30 : vector<8x8xbf16> to vector<1x8x8xbf16>
    %35 = vector.shape_cast %31 : vector<8x8xbf16> to vector<1x8x8xbf16>
    %36 = vector.shape_cast %32 : vector<8x8xbf16> to vector<1x8x8xbf16>
    %37 = tpu.concatenate %33, %34, %35, %36 in 0 : vector<1x8x8xbf16>, vector<1x8x8xbf16>, vector<1x8x8xbf16>, vector<1x8x8xbf16> -> vector<4x8x8xbf16>
    "tpu.trace_start"() <{level = 10 : i32, message = "bqd,bkd->bqk"}> : () -> ()
    %cst_10 = arith.constant dense<0.000000e+00> : vector<4x8x8xf32>
    %38 = tpu.matmul %19, %28, %cst_10 {dimension_numbers = #tpu.dot_dimension_numbers<[2], [2], [1], [1], [0, 0, 0, 1, 1, 1], [0], [0]>} : vector<4x8x8xbf16>, vector<4x8x8xbf16>, vector<4x8x8xf32> -> vector<4x8x8xf32>
    "tpu.trace_stop"() : () -> ()
    %cst_11 = arith.constant 0.353553385 : f32
    %39 = vector.broadcast %cst_11 : f32 to vector<4x8x8xf32>
    %40 = arith.mulf %38, %39 : vector<4x8x8xf32>
    %cst_12 = arith.constant dense<0xFF800000> : vector<4x8xf32>
    %41 = vector.multi_reduction <maximumf>, %40, %cst_12 [2] : vector<4x8x8xf32> to vector<4x8xf32>
    %42 = vector.shape_cast %41 : vector<4x8xf32> to vector<4x8x1xf32>
    %43 = vector.broadcast %42 : vector<4x8x1xf32> to vector<4x8x8xf32>
    %44 = arith.subf %40, %43 : vector<4x8x8xf32>
    %45 = math.exp %44 : vector<4x8x8xf32>
    %cst_13 = arith.constant dense<0.000000e+00> : vector<4x8xf32>
    %46 = vector.multi_reduction <add>, %45, %cst_13 [2] : vector<4x8x8xf32> to vector<4x8xf32>
    %47 = vector.shape_cast %46 : vector<4x8xf32> to vector<4x8x1xf32>
    %48 = tpu.reciprocal %47 {approx = true} : vector<4x8x1xf32> -> vector<4x8x1xf32>
    %49 = vector.broadcast %48 : vector<4x8x1xf32> to vector<4x8x8xf32>
    %50 = arith.mulf %45, %49 : vector<4x8x8xf32>
    %51 = arith.truncf %50 : vector<4x8x8xf32> to vector<4x8x8xbf16>
    "tpu.trace_start"() <{level = 10 : i32, message = "bqk,bkd->bqd"}> : () -> ()
    %cst_14 = arith.constant dense<0.000000e+00> : vector<4x8x8xf32>
    %52 = tpu.matmul %51, %37, %cst_14 {dimension_numbers = #tpu.dot_dimension_numbers<[2], [1], [1], [2], [0, 0, 0, 1, 1, 2], [0], [0]>} : vector<4x8x8xbf16>, vector<4x8x8xbf16>, vector<4x8x8xf32> -> vector<4x8x8xf32>
    "tpu.trace_stop"() : () -> ()
    %53 = vector.extract_strided_slice %52 {offsets = [0, 0, 0], sizes = [1, 8, 8], strides = [1, 1, 1]} : vector<4x8x8xf32> to vector<1x8x8xf32>
    %54 = vector.shape_cast %53 : vector<1x8x8xf32> to vector<8x8xf32>
    %55 = vector.extract_strided_slice %52 {offsets = [1, 0, 0], sizes = [1, 8, 8], strides = [1, 1, 1]} : vector<4x8x8xf32> to vector<1x8x8xf32>
    %56 = vector.shape_cast %55 : vector<1x8x8xf32> to vector<8x8xf32>
    %57 = vector.extract_strided_slice %52 {offsets = [2, 0, 0], sizes = [1, 8, 8], strides = [1, 1, 1]} : vector<4x8x8xf32> to vector<1x8x8xf32>
    %58 = vector.shape_cast %57 : vector<1x8x8xf32> to vector<8x8xf32>
    %59 = vector.extract_strided_slice %52 {offsets = [3, 0, 0], sizes = [1, 8, 8], strides = [1, 1, 1]} : vector<4x8x8xf32> to vector<1x8x8xf32>
    %60 = vector.shape_cast %59 : vector<1x8x8xf32> to vector<8x8xf32>
    %61 = tpu.concatenate %54, %56, %58, %60 in 1 : vector<8x8xf32>, vector<8x8xf32>, vector<8x8xf32>, vector<8x8xf32> -> vector<8x32xf32>
    %62 = arith.truncf %61 : vector<8x32xf32> to vector<8x32xbf16>
    %cst_15 = arith.constant dense<0.000000e+00> : vector<8x32xf32>
    %63 = tpu.matmul %62, %4, %cst_15 {dimension_numbers = #tpu.dot_dimension_numbers<[1], [0], [0], [1], [0, 0, 1, 1], [], []>} : vector<8x32xbf16>, vector<32x32xbf16>, vector<8x32xf32> -> vector<8x32xf32>
    %64 = vector.broadcast %5 : vector<1x32xf32> to vector<8x32xf32>
    %65 = arith.addf %63, %64 : vector<8x32xf32>
    %66 = arith.addf %1, %65 : vector<8x32xf32>
    %c0_16 = arith.constant 0 : index
    %c0_17 = arith.constant 0 : index
    %67 = vector.load %arg7[%c0_16, %c0_17] : memref<1x32xf32, #tpu.memory_space<vmem>>, vector<1x32xf32>
    %c0_18 = arith.constant 0 : index
    %c0_19 = arith.constant 0 : index
    %68 = vector.load %arg8[%c0_18, %c0_19] : memref<1x32xf32, #tpu.memory_space<vmem>>, vector<1x32xf32>
    %cst_20 = arith.constant dense<0.000000e+00> : vector<8xf32>
    %69 = vector.multi_reduction <add>, %66, %cst_20 [1] : vector<8x32xf32> to vector<8xf32>
    %70 = vector.shape_cast %69 : vector<8xf32> to vector<8x1xf32>
    %cst_21 = arith.constant 3.200000e+01 : f32
    %71 = vector.broadcast %cst_21 : f32 to vector<8x1xf32>
    %72 = arith.divf %70, %71 : vector<8x1xf32>
    %73 = vector.broadcast %72 : vector<8x1xf32> to vector<8x32xf32>
    %74 = arith.subf %66, %73 : vector<8x32xf32>
    %75 = arith.mulf %74, %74 : vector<8x32xf32>
    %cst_22 = arith.constant dense<0.000000e+00> : vector<8xf32>
    %76 = vector.multi_reduction <add>, %75, %cst_22 [1] : vector<8x32xf32> to vector<8xf32>
    %77 = vector.shape_cast %76 : vector<8xf32> to vector<8x1xf32>
    %cst_23 = arith.constant 3.200000e+01 : f32
    %78 = vector.broadcast %cst_23 : f32 to vector<8x1xf32>
    %79 = arith.divf %77, %78 : vector<8x1xf32>
    %80 = vector.broadcast %72 : vector<8x1xf32> to vector<8x32xf32>
    %81 = arith.subf %66, %80 : vector<8x32xf32>
    %cst_24 = arith.constant 9.99999974E-6 : f32
    %82 = vector.broadcast %cst_24 : f32 to vector<8x1xf32>
    %83 = arith.addf %79, %82 : vector<8x1xf32>
    %84 = math.rsqrt %83 : vector<8x1xf32>
    %85 = vector.broadcast %84 : vector<8x1xf32> to vector<8x32xf32>
    %86 = arith.mulf %81, %85 : vector<8x32xf32>
    %87 = vector.broadcast %67 : vector<1x32xf32> to vector<8x32xf32>
    %88 = arith.mulf %86, %87 : vector<8x32xf32>
    %89 = vector.broadcast %68 : vector<1x32xf32> to vector<8x32xf32>
    %90 = arith.addf %88, %89 : vector<8x32xf32>
    %91 = vector.shape_cast %90 : vector<8x32xf32> to vector<1x8x32xf32>
    %c0_25 = arith.constant 0 : index
    %c0_26 = arith.constant 0 : index
    %c0_27 = arith.constant 0 : index
    %92 = vector.load %arg9[%c0_25, %c0_26, %c0_27] : memref<1x8x32xf32, #tpu.memory_space<vmem>>, vector<1x8x32xf32>
    tpu.vector_store %arg9[%c0_25, %c0_26, %c0_27], %91 {strides = array<i32>} : memref<1x8x32xf32, #tpu.memory_space<vmem>>, vector<1x8x32xf32>,
    %c0_28 = arith.constant 0 : index
    %c0_29 = arith.constant 0 : index
    %93 = vector.load %arg6[%c0_28, %c0_29] : memref<32x4xf32, #tpu.memory_space<vmem>>, vector<32x4xf32>
    %cst_30 = arith.constant dense<0.000000e+00> : vector<8x4xf32>
    %94 = tpu.matmul %90, %93, %cst_30 {dimension_numbers = #tpu.dot_dimension_numbers<[1], [0], [0], [1], [0, 0, 1, 1], [], []>} : vector<8x32xf32>, vector<32x4xf32>, vector<8x4xf32> -> vector<8x4xf32>
    %cst_31 = arith.constant dense<0xFF800000> : vector<8xf32>
    %95 = vector.multi_reduction <maximumf>, %94, %cst_31 [1] : vector<8x4xf32> to vector<8xf32>
    %96 = vector.shape_cast %95 : vector<8xf32> to vector<8x1xf32>
    %97 = vector.broadcast %96 : vector<8x1xf32> to vector<8x4xf32>
    %98 = arith.subf %94, %97 : vector<8x4xf32>
    %99 = math.exp %98 : vector<8x4xf32>
    %cst_32 = arith.constant dense<0.000000e+00> : vector<8xf32>
    %100 = vector.multi_reduction <add>, %99, %cst_32 [1] : vector<8x4xf32> to vector<8xf32>
    %101 = vector.shape_cast %100 : vector<8xf32> to vector<8x1xf32>
    %102 = tpu.reciprocal %101 {approx = true} : vector<8x1xf32> -> vector<8x1xf32>
    %103 = vector.broadcast %102 : vector<8x1xf32> to vector<8x4xf32>
    %104 = arith.mulf %99, %103 : vector<8x4xf32>
    %105 = tpu.iota {dimensions = array<i32: 1>} : vector<8x4xi32>
    %cst_33 = arith.constant 0.000000e+00 : f32
    %106 = vector.broadcast %cst_33 : f32 to vector<8x4xf32>
    %cst_34 = arith.constant dense<0xFF800000> : vector<8xf32>
    %107 = vector.multi_reduction <maximumf>, %104, %cst_34 [1] : vector<8x4xf32> to vector<8xf32>
    %108 = vector.shape_cast %107 : vector<8xf32> to vector<8x1xf32>
    %109 = vector.broadcast %108 : vector<8x1xf32> to vector<8x4xf32>
    %110 = arith.cmpf oeq, %104, %109 : vector<8x4xf32>
    %c4_i32 = arith.constant 4 : i32
    %111 = vector.broadcast %c4_i32 : i32 to vector<8x4xi32>
    %112 = arith.select %110, %105, %111 : vector<8x4xi1>, vector<8x4xi32>
    %cst_35 = arith.constant dense<2147483647> : vector<8xi32>
    %113 = vector.multi_reduction <minsi>, %112, %cst_35 [1] : vector<8x4xi32> to vector<8xi32>
    %114 = vector.shape_cast %113 : vector<8xi32> to vector<8x1xi32>
    %115 = vector.broadcast %114 : vector<8x1xi32> to vector<8x4xi32>
    %116 = arith.cmpi eq, %105, %115 : vector<8x4xi32>
    %117 = arith.extui %116 : vector<8x4xi1> to vector<8x4xi32>
    %118 = arith.sitofp %117 : vector<8x4xi32> to vector<8x4xf32>
    %119 = arith.addf %106, %118 : vector<8x4xf32>
    %cst_36 = arith.constant 0.000000e+00 : f32
    %120 = vector.broadcast %cst_36 : f32 to vector<8x4xf32>
    %121 = arith.cmpf ogt, %118, %120 : vector<8x4xf32>
    %cst_37 = arith.constant 0xFF800000 : f32
    %122 = vector.broadcast %cst_37 : f32 to vector<8x4xf32>
    %123 = arith.select %121, %122, %104 : vector<8x4xi1>, vector<8x4xf32>
    %cst_38 = arith.constant dense<0xFF800000> : vector<8xf32>
    %124 = vector.multi_reduction <maximumf>, %123, %cst_38 [1] : vector<8x4xf32> to vector<8xf32>
    %125 = vector.shape_cast %124 : vector<8xf32> to vector<8x1xf32>
    %126 = vector.broadcast %125 : vector<8x1xf32> to vector<8x4xf32>
    %127 = arith.cmpf oeq, %123, %126 : vector<8x4xf32>
    %c4_i32_39 = arith.constant 4 : i32
    %128 = vector.broadcast %c4_i32_39 : i32 to vector<8x4xi32>
    %129 = arith.select %127, %105, %128 : vector<8x4xi1>, vector<8x4xi32>
    %cst_40 = arith.constant dense<2147483647> : vector<8xi32>
    %130 = vector.multi_reduction <minsi>, %129, %cst_40 [1] : vector<8x4xi32> to vector<8xi32>
    %131 = vector.shape_cast %130 : vector<8xi32> to vector<8x1xi32>
    %132 = vector.broadcast %131 : vector<8x1xi32> to vector<8x4xi32>
    %133 = arith.cmpi eq, %105, %132 : vector<8x4xi32>
    %134 = arith.extui %133 : vector<8x4xi1> to vector<8x4xi32>
    %135 = arith.sitofp %134 : vector<8x4xi32> to vector<8x4xf32>
    %136 = arith.addf %119, %135 : vector<8x4xf32>
    %137 = arith.mulf %104, %136 : vector<8x4xf32>
    %cst_41 = arith.constant dense<0.000000e+00> : vector<8xf32>
    %138 = vector.multi_reduction <add>, %137, %cst_41 [1] : vector<8x4xf32> to vector<8xf32>
    %139 = vector.shape_cast %138 : vector<8xf32> to vector<8x1xf32>
    %140 = tpu.reciprocal %139 {approx = true} : vector<8x1xf32> -> vector<8x1xf32>
    %141 = vector.broadcast %140 : vector<8x1xf32> to vector<8x4xf32>
    %142 = arith.mulf %137, %141 : vector<8x4xf32>
    %143 = vector.shape_cast %142 : vector<8x4xf32> to vector<1x8x4xf32>
    %c0_42 = arith.constant 0 : index
    %c0_43 = arith.constant 0 : index
    %c0_44 = arith.constant 0 : index
    %144 = vector.load %arg10[%c0_42, %c0_43, %c0_44] : memref<1x8x4xf32, #tpu.memory_space<vmem>>, vector<1x8x4xf32>
    tpu.vector_store %arg10[%c0_42, %c0_43, %c0_44], %143 {strides = array<i32>} : memref<1x8x4xf32, #tpu.memory_space<vmem>>, vector<1x8x4xf32>,
    %cst_45 = arith.constant dense<0.000000e+00> : vector<4xf32>
    %145 = vector.multi_reduction <add>, %136, %cst_45 [0] : vector<8x4xf32> to vector<4xf32>
    %146 = vector.shape_cast %145 : vector<4xf32> to vector<1x4xf32>
    %cst_46 = arith.constant dense<0.000000e+00> : vector<4xf32>
    %147 = vector.multi_reduction <add>, %104, %cst_46 [0] : vector<8x4xf32> to vector<4xf32>
    %148 = vector.shape_cast %147 : vector<4xf32> to vector<1x4xf32>
    %149 = math.log %101 : vector<8x1xf32>
    %150 = arith.addf %96, %149 : vector<8x1xf32>
    %151 = arith.mulf %150, %150 : vector<8x1xf32>
    %cst_47 = arith.constant dense<0.000000e+00> : vector<1xf32>
    %152 = vector.multi_reduction <add>, %151, %cst_47 [0] : vector<8x1xf32> to vector<1xf32>
    %153 = vector.shape_cast %152 : vector<1xf32> to vector<1x1xf32>
    %cst_48 = arith.constant 0.000000e+00 : f32
    %154 = vector.broadcast %cst_48 : f32 to vector<1x124xf32>
    %155 = tpu.concatenate %146, %154 in 1 : vector<1x4xf32>, vector<1x124xf32> -> vector<1x128xf32>
    %cst_49 = arith.constant 0.000000e+00 : f32
    %156 = vector.broadcast %cst_49 : f32 to vector<1x124xf32>
    %157 = tpu.concatenate %148, %156 in 1 : vector<1x4xf32>, vector<1x124xf32> -> vector<1x128xf32>
    %cst_50 = arith.constant 0.000000e+00 : f32
    %158 = vector.broadcast %cst_50 : f32 to vector<1x127xf32>
    %159 = tpu.concatenate %153, %158 in 1 : vector<1x1xf32>, vector<1x127xf32> -> vector<1x128xf32>
    %160 = tpu.concatenate %155, %157, %159 in 0 : vector<1x128xf32>, vector<1x128xf32>, vector<1x128xf32> -> vector<3x128xf32>
    %c0_51 = arith.constant 0 : index
    %c0_52 = arith.constant 0 : index
    %c0_53 = arith.constant 0 : index
    %161 = vector.load %arg11[%c0_51, %c0_52, %c0_53] : memref<1x3x128xf32, #tpu.memory_space<vmem>>, vector<1x3x128xf32>
    %162 = vector.shape_cast %161 : vector<1x3x128xf32> to vector<3x128xf32>
    %163 = vector.shape_cast %160 : vector<3x128xf32> to vector<1x3x128xf32>
    tpu.vector_store %arg11[%c0_51, %c0_52, %c0_53], %163 {strides = array<i32>} : memref<1x3x128xf32, #tpu.memory_space<vmem>>, vector<1x3x128xf32>,
    return
  }
  func.func @transform_0(%arg0: i32) -> (i32, i32, i32) {
    %c0_i32 = arith.constant 0 : i32
    %c0_i32_0 = arith.constant 0 : i32
    %c0_i32_1 = arith.constant 0 : i32
    return %arg0, %c0_i32, %c0_i32_0 : i32, i32, i32
  }
  func.func @transform_1(%arg0: i32) -> (i32, i32) {
    %c0_i32 = arith.constant 0 : i32
    %c0_i32_0 = arith.constant 0 : i32
    %c0_i32_1 = arith.constant 0 : i32
    return %c0_i32, %c0_i32_0 : i32, i32
  }
  func.func @transform_2(%arg0: i32) -> (i32, i32) {
    %c0_i32 = arith.constant 0 : i32
    %c0_i32_0 = arith.constant 0 : i32
    %c0_i32_1 = arith.constant 0 : i32
    return %c0_i32, %c0_i32_0 : i32, i32
  }
  func.func @transform_3(%arg0: i32) -> (i32, i32) {
    %c0_i32 = arith.constant 0 : i32
    %c0_i32_0 = arith.constant 0 : i32
    %c0_i32_1 = arith.constant 0 : i32
    return %c0_i32, %c0_i32_0 : i32, i32
  }
  func.func @transform_4(%arg0: i32) -> (i32, i32) {
    %c0_i32 = arith.constant 0 : i32
    %c0_i32_0 = arith.constant 0 : i32
    %c0_i32_1 = arith.constant 0 : i32
    return %c0_i32, %c0_i32_0 : i32, i32
  }
  func.func @transform_5(%arg0: i32) -> (i32, i32) {
    %c0_i32 = arith.constant 0 : i32
    %c0_i32_0 = arith.constant 0 : i32
    %c0_i32_1 = arith.constant 0 : i32
    return %c0_i32, %c0_i32_0 : i32, i32
  }
  func.func @transform_6(%arg0: i32) -> (i32, i32) {
    %c0_i32 = arith.constant 0 : i32
    %c0_i32_0 = arith.constant 0 : i32
    %c0_i32_1 = arith.constant 0 : i32
    return %c0_i32, %c0_i32_0 : i32, i32
  }
  func.func @transform_7(%arg0: i32) -> (i32, i32) {
    %c0_i32 = arith.constant 0 : i32
    %c0_i32_0 = arith.constant 0 : i32
    %c0_i32_1 = arith.constant 0 : i32
    return %c0_i32, %c0_i32_0 : i32, i32
  }
  func.func @transform_8(%arg0: i32) -> (i32, i32, i32) {
    %c0_i32 = arith.constant 0 : i32
    %c0_i32_0 = arith.constant 0 : i32
    %c0_i32_1 = arith.constant 0 : i32
    return %arg0, %c0_i32, %c0_i32_0 : i32, i32, i32
  }
  func.func @transform_9(%arg0: i32) -> (i32, i32, i32) {
    %c0_i32 = arith.constant 0 : i32
    %c0_i32_0 = arith.constant 0 : i32
    %c0_i32_1 = arith.constant 0 : i32
    return %arg0, %c0_i32, %c0_i32_0 : i32, i32, i32
  }
  func.func @transform_10(%arg0: i32) -> (i32, i32, i32) {
    %c0_i32 = arith.constant 0 : i32
    %c0_i32_0 = arith.constant 0 : i32
    %c0_i32_1 = arith.constant 0 : i32
    return %arg0, %c0_i32, %c0_i32_0 : i32, i32, i32
  }
}

</mosaic_0001>

<llo_original>
// kernel: moae_transformer_block.3
$region0: #{moae_transformer_block.3}
  #allocation0 [shape = 'u32[]', space=smem, size = 0x4, offset = 0x4, fixed_abs, tag = 'smem constant byte address 0x4 - core index']
  #allocation1 [shape = 'u32[72,128]{1,0:T(1,128)}', space=vmem, size = 0x9000, scoped, tag = 'internal scratch']
  #allocation2 [shape = 'f32[8,32]{1,0:T(8,128)}', space=vmem, size = 0x1000, scoped, tag = 'scratch operand']
  #allocation3 [shape = 's32[1]{0}', space=sflag, size = 0x4, scoped, tag = 'scoped memory for moae_transformer_block.3']
  #allocation4 [shape = 'u8[1024]{0}', space=smem, size = 0x400, scoped, tag = 'prefetched SMEM operand 0']
  %s0 = inlined_call_operand.vmem [shape: s32[2,4], index: 0, kind: input, shape index: {}]
  %s1 = inlined_call_operand.vmem [shape: f32[2,8,32], index: 1, kind: input, shape index: {}]
  %s2 = inlined_call_operand.vmem [shape: f32[2,8,4], index: 2, kind: input, shape index: {}]
  %s3 = inlined_call_operand.hbm [shape: bf16[4,32,96], index: 3, kind: input, shape index: {}]
  %s4 = inlined_call_operand.vmem [shape: f32[4,1,96], index: 4, kind: input, shape index: {}]
  %s5 = inlined_call_operand.hbm [shape: bf16[4,32,32], index: 5, kind: input, shape index: {}]
  %s6 = inlined_call_operand.vmem [shape: f32[4,1,32], index: 6, kind: input, shape index: {}]
  %s7 = inlined_call_operand.vmem [shape: f32[1,32], index: 7, kind: input, shape index: {}]
  %s8 = inlined_call_operand.vmem [shape: f32[1,32], index: 8, kind: input, shape index: {}]
  %s9 = inlined_call_operand.hbm [shape: f32[2,8,32], index: 9, kind: output, shape index: {}]
  %s10 = sld [smem:[#allocation0]]
  $region85: #{moae_transformer_block.3} parent=0
    _
  %s12 = ssub.s32 1, %s10
  %s13 = scalar_select 0, %s12, %s10
  %s15 = sshll.u32 %s0, 4
  %s16 = int_to_ptr.vmem [resolvable:$true] %s15
  %18 = dma.vmem_to_smem %s16, 32, [#allocation4], [#allocation3]
  %20 = dma.done [#allocation3], 32
  %21 = sfence
  $region1: #{moae_transformer_block.3} parent=0
    #allocation5 [shape = 'u8[16384]{0}', space=vmem, size = 0x4000, scoped, tag = 'input window, operand 3']
    #allocation6 [shape = 's32[2]{0}', space=sflag, size = 0x8, scoped, tag = 'scoped memory for moae_transformer_block.3']
    #allocation7 [shape = 's32[2]{0}', space=sflag, size = 0x8, scoped, tag = 'scoped memory for moae_transformer_block.3']
    #allocation8 [shape = 'u8[16384]{0}', space=vmem, size = 0x4000, scoped, tag = 'input window, operand 5']
    #allocation9 [shape = 's32[2]{0}', space=sflag, size = 0x8, scoped, tag = 'scoped memory for moae_transformer_block.3']
    #allocation10 [shape = 'u8[8192]{0}', space=vmem, size = 0x2000, scoped, tag = 'output window, operand 0']
    %22 = vsyncpa [#allocation6], 0
    %s23 = scalar_lea.sflag [#allocation6], 1
    %24 = vsyncpa %s23, 0
    %25 = vsyncpa [#allocation9], 0
    %s26 = scalar_lea.sflag [#allocation9], 1
    %27 = vsyncpa %s26, 0
    %28 = vsyncpa [#allocation7], 0
    %s29 = scalar_lea.sflag [#allocation7], 1
    %30 = vsyncpa %s29, 0
    loop: start=0, step=1, limit=10
    $region2: #{moae_transformer_block.3} parent=1 // loop_pre_header
      _
    $region3: #{moae_transformer_block.3} parent=1 // loop_header
      %s32 = sphi 0, %s36
      %p33 = scmp.ge.s32.totalorder %s32, 10
      %s39 = sphi 0, %s51
      %s40 = sphi 0, %s47
      %s41 = sphi 0, %s39
      %s42 = sphi 0, %s40
      %s43 = sphi 0, %s41
      %s44 = sphi 0, %s42
      %s54 = sphi 0, %s56
      %s57 = sphi 0, %s54
      %s58 = sphi 0, %s57
      %s74 = sphi 0, %s58
      %s80 = sphi 0, %s82
      %s83 = sphi 0, %s80
      %s84 = sphi 0, %s83
      %s100 = sphi 0, %s84
      %s106 = sphi 0, %s108
      %s109 = sphi 0, %s106
      %s110 = sphi 0, %s109
      %s126 = sphi 0, %s110
      %s132 = sphi 0, %s134
      %s135 = sphi 0, %s132
      %s136 = sphi 0, %s135
      %s152 = sphi 0, %s136
      %s158 = sphi 0, %s160
      %s161 = sphi 0, %s158
      %s162 = sphi 0, %s161
      %s178 = sphi 0, %s162
      %s184 = sphi 0, %s186
      %s187 = sphi 0, %s184
      %s188 = sphi 0, %s187
      %s204 = sphi 0, %s188
      %s208 = sphi 0, %s208
      %s210 = sphi 0, %s208
      %s211 = sphi 0, %s210
      %s225 = sphi 0, %s211
      %s229 = sphi 0, %s229
      %s231 = sphi 0, %s229
      %s232 = sphi 0, %s231
      %s246 = sphi 0, %s232
      %s252 = sphi 0, %s254
      %s255 = sphi 0, %s252
      %s256 = sphi 0, %s255
      %s272 = sphi 0, %s256
    $region4: #{moae_transformer_block.3} parent=1 // loop_header_branch
      %35 = sbr.rel (%p33) target = $region8
    $region5: #{moae_transformer_block.3} parent=1 // loop_body
      %s37 = ssub.s32 %s32, 1
      %s38 = ssub.s32 %s32, 2
      %s45 = sadd.s32 1, %s40
      %p46 = scmp.ge.s32.totalorder %s45, 4
      %s47 = scalar_select %p46, 0, %s45
      %s48 = sadd.s32 1, %s39
      %s49 = scalar_select %p46, %s48, %s39
      %p50 = scmp.ge.s32.totalorder %s49, 2
      %s51 = scalar_select %p50, 0, %s49
      %s52 = ssub.s32 %s39, %s51
      %p53 = scmp.eq.s32.totalorder %s52, 0
      %s55 = sadd.s32 %s54, 1
      %s56 = scalar_select %p53, %s54, %s55
      %p59 = pneg %p53
      %p60 = scmp.eq.s32.totalorder %s32, 7
      %p61 = por %p59, %p60
      %p62 = scmp.ne.s32.totalorder %s54, %s57
      %p63 = scmp.eq.s32.totalorder %s32, 0
      %p64 = por %p62, %p63
      %p65 = scmp.ne.s32.totalorder %s54, %s57
      %p66 = scmp.eq.s32.totalorder %s37, 7
      %p67 = por %p65, %p66
      %p68 = scmp.ne.s32.totalorder %s57, %s58
      %p69 = scmp.eq.s32.totalorder %s37, 0
      %p70 = por %p68, %p69
      %p71 = scmp.ne.s32.totalorder %s57, %s58
      %p72 = scmp.eq.s32.totalorder %s38, 7
      %p73 = por %p71, %p72
      %p75 = scmp.ne.s32.totalorder %s58, %s74
      %p76 = scmp.eq.s32.totalorder %s38, 0
      %p77 = por %p75, %p76
      %s78 = ssub.s32 %s39, %s51
      %p79 = scmp.eq.s32.totalorder %s78, 0
      %s81 = sadd.s32 %s80, 1
      %s82 = scalar_select %p79, %s80, %s81
      %p85 = pneg %p79
      %p86 = scmp.eq.s32.totalorder %s32, 7
      %p87 = por %p85, %p86
      %p88 = scmp.ne.s32.totalorder %s80, %s83
      %p89 = scmp.eq.s32.totalorder %s32, 0
      %p90 = por %p88, %p89
      %p91 = scmp.ne.s32.totalorder %s80, %s83
      %p92 = scmp.eq.s32.totalorder %s37, 7
      %p93 = por %p91, %p92
      %p94 = scmp.ne.s32.totalorder %s83, %s84
      %p95 = scmp.eq.s32.totalorder %s37, 0
      %p96 = por %p94, %p95
      %p97 = scmp.ne.s32.totalorder %s83, %s84
      %p98 = scmp.eq.s32.totalorder %s38, 7
      %p99 = por %p97, %p98
      %p101 = scmp.ne.s32.totalorder %s84, %s100
      %p102 = scmp.eq.s32.totalorder %s38, 0
      %p103 = por %p101, %p102
      %s104 = ssub.s32 %s40, %s47
      %p105 = scmp.eq.s32.totalorder %s104, 0
      %s107 = sadd.s32 %s106, 1
      %s108 = scalar_select %p105, %s106, %s107
      %p111 = pneg %p105
      %p112 = scmp.eq.s32.totalorder %s32, 7
      %p113 = por %p111, %p112
      %p114 = scmp.ne.s32.totalorder %s106, %s109
      %p115 = scmp.eq.s32.totalorder %s32, 0
      %p116 = por %p114, %p115
      %p117 = scmp.ne.s32.totalorder %s106, %s109
      %p118 = scmp.eq.s32.totalorder %s37, 7
      %p119 = por %p117, %p118
      %p120 = scmp.ne.s32.totalorder %s109, %s110
      %p121 = scmp.eq.s32.totalorder %s37, 0
      %p122 = por %p120, %p121
      %p123 = scmp.ne.s32.totalorder %s109, %s110
      %p124 = scmp.eq.s32.totalorder %s38, 7
      %p125 = por %p123, %p124
      %p127 = scmp.ne.s32.totalorder %s110, %s126
      %p128 = scmp.eq.s32.totalorder %s38, 0
      %p129 = por %p127, %p128
      %s130 = ssub.s32 %s40, %s47
      %p131 = scmp.eq.s32.totalorder %s130, 0
      %s133 = sadd.s32 %s132, 1
      %s134 = scalar_select %p131, %s132, %s133
      %p137 = pneg %p131
      %p138 = scmp.eq.s32.totalorder %s32, 7
      %p139 = por %p137, %p138
      %p140 = scmp.ne.s32.totalorder %s132, %s135
      %p141 = scmp.eq.s32.totalorder %s32, 0
      %p142 = por %p140, %p141
      %p143 = scmp.ne.s32.totalorder %s132, %s135
      %p144 = scmp.eq.s32.totalorder %s37, 7
      %p145 = por %p143, %p144
      %p146 = scmp.ne.s32.totalorder %s135, %s136
      %p147 = scmp.eq.s32.totalorder %s37, 0
      %p148 = por %p146, %p147
      %p149 = scmp.ne.s32.totalorder %s135, %s136
      %p150 = scmp.eq.s32.totalorder %s38, 7
      %p151 = por %p149, %p150
      %p153 = scmp.ne.s32.totalorder %s136, %s152
      %p154 = scmp.eq.s32.totalorder %s38, 0
      %p155 = por %p153, %p154
      %s156 = ssub.s32 %s40, %s47
      %p157 = scmp.eq.s32.totalorder %s156, 0
      %s159 = sadd.s32 %s158, 1
      %s160 = scalar_select %p157, %s158, %s159
      %p163 = pneg %p157
      %p164 = scmp.eq.s32.totalorder %s32, 7
      %p165 = por %p163, %p164
      %p166 = scmp.ne.s32.totalorder %s158, %s161
      %p167 = scmp.eq.s32.totalorder %s32, 0
      %p168 = por %p166, %p167
      %p169 = scmp.ne.s32.totalorder %s158, %s161
      %p170 = scmp.eq.s32.totalorder %s37, 7
      %p171 = por %p169, %p170
      %p172 = scmp.ne.s32.totalorder %s161, %s162
      %p173 = scmp.eq.s32.totalorder %s37, 0
      %p174 = por %p172, %p173
      %p175 = scmp.ne.s32.totalorder %s161, %s162
      %p176 = scmp.eq.s32.totalorder %s38, 7
      %p177 = por %p175, %p176
      %p179 = scmp.ne.s32.totalorder %s162, %s178
      %p180 = scmp.eq.s32.totalorder %s38, 0
      %p181 = por %p179, %p180
      %s182 = ssub.s32 %s40, %s47
      %p183 = scmp.eq.s32.totalorder %s182, 0
      %s185 = sadd.s32 %s184, 1
      %s186 = scalar_select %p183, %s184, %s185
      %p189 = pneg %p183
      %p190 = scmp.eq.s32.totalorder %s32, 7
      %p191 = por %p189, %p190
      %p192 = scmp.ne.s32.totalorder %s184, %s187
      %p193 = scmp.eq.s32.totalorder %s32, 0
      %p194 = por %p192, %p193
      %p195 = scmp.ne.s32.totalorder %s184, %s187
      %p196 = scmp.eq.s32.totalorder %s37, 7
      %p197 = por %p195, %p196
      %p198 = scmp.ne.s32.totalorder %s187, %s188
      %p199 = scmp.eq.s32.totalorder %s37, 0
      %p200 = por %p198, %p199
      %p201 = scmp.ne.s32.totalorder %s187, %s188
      %p202 = scmp.eq.s32.totalorder %s38, 7
      %p203 = por %p201, %p202
      %p205 = scmp.ne.s32.totalorder %s188, %s204
      %p206 = scmp.eq.s32.totalorder %s38, 0
      %p207 = por %p205, %p206
      %s209 = sadd.s32 %s208, 1
      %p212 = scmp.eq.s32.totalorder %s32, 7
      %p213 = scmp.ne.s32.totalorder %s208, %s210
      %p214 = scmp.eq.s32.totalorder %s32, 0
      %p215 = por %p213, %p214
      %p216 = scmp.ne.s32.totalorder %s208, %s210
      %p217 = scmp.eq.s32.totalorder %s37, 7
      %p218 = por %p216, %p217
      %p219 = scmp.ne.s32.totalorder %s210, %s211
      %p220 = scmp.eq.s32.totalorder %s37, 0
      %p221 = por %p219, %p220
      %p222 = scmp.ne.s32.totalorder %s210, %s211
      %p223 = scmp.eq.s32.totalorder %s38, 7
      %p224 = por %p222, %p223
      %p226 = scmp.ne.s32.totalorder %s211, %s225
      %p227 = scmp.eq.s32.totalorder %s38, 0
      %p228 = por %p226, %p227
      %s230 = sadd.s32 %s229, 1
      %p233 = scmp.eq.s32.totalorder %s32, 7
      %p234 = scmp.ne.s32.totalorder %s229, %s231
      %p235 = scmp.eq.s32.totalorder %s32, 0
      %p236 = por %p234, %p235
      %p237 = scmp.ne.s32.totalorder %s229, %s231
      %p238 = scmp.eq.s32.totalorder %s37, 7
      %p239 = por %p237, %p238
      %p240 = scmp.ne.s32.totalorder %s231, %s232
      %p241 = scmp.eq.s32.totalorder %s37, 0
      %p242 = por %p240, %p241
      %p243 = scmp.ne.s32.totalorder %s231, %s232
      %p244 = scmp.eq.s32.totalorder %s38, 7
      %p245 = por %p243, %p244
      %p247 = scmp.ne.s32.totalorder %s232, %s246
      %p248 = scmp.eq.s32.totalorder %s38, 0
      %p249 = por %p247, %p248
      %s250 = ssub.s32 %s39, %s51
      %p251 = scmp.eq.s32.totalorder %s250, 0
      %s253 = sadd.s32 %s252, 1
      %s254 = scalar_select %p251, %s252, %s253
      %p257 = pneg %p251
      %p258 = scmp.eq.s32.totalorder %s32, 7
      %p259 = por %p257, %p258
      %p260 = scmp.ne.s32.totalorder %s252, %s255
      %p261 = scmp.eq.s32.totalorder %s32, 0
      %p262 = por %p260, %p261
      %p263 = scmp.ne.s32.totalorder %s252, %s255
      %p264 = scmp.eq.s32.totalorder %s37, 7
      %p265 = por %p263, %p264
      %p266 = scmp.ne.s32.totalorder %s255, %s256
      %p267 = scmp.eq.s32.totalorder %s37, 0
      %p268 = por %p266, %p267
      %p269 = scmp.ne.s32.totalorder %s255, %s256
      %p270 = scmp.eq.s32.totalorder %s38, 7
      %p271 = por %p269, %p270
      %p273 = scmp.ne.s32.totalorder %s256, %s272
      %p274 = scmp.eq.s32.totalorder %s38, 0
      %p275 = por %p273, %p274
      %p276 = scmp.le.s32.totalorder 1, %s32
      %p277 = scmp.lt.s32.totalorder %s32, 9
      %p278 = pnand %p276, %p277
      %p279 = pneg %p278
      // Predicated region
      $region9: #{moae_transformer_block.3} parent=5 // pred_check
        _
      $region10: #{moae_transformer_block.3} parent=5 // pred_check_branch
        %281 = sbr.rel (%p278) target = $region12
      $region11: #{moae_transformer_block.3} parent=5 // pred_region
        %s282 = ssub.s32 %s32, 1
        // Predicated region
        $region13: #{moae_transformer_block.3} parent=11 // pred_check
          %p283 = pneg %p221
        $region14: #{moae_transformer_block.3} parent=11 // pred_check_branch
          %285 = sbr.rel (%p283) target = $region16
        $region15: #{moae_transformer_block.3} parent=11 // pred_region
          _
        $region16: #{moae_transformer_block.3} parent=11 // pred_fallthru
          _
        // Predicated region
        $region17: #{moae_transformer_block.3} parent=11 // pred_check
          %p286 = pneg %p242
        $region18: #{moae_transformer_block.3} parent=11 // pred_check_branch
          %288 = sbr.rel (%p286) target = $region20
        $region19: #{moae_transformer_block.3} parent=11 // pred_region
          _
        $region20: #{moae_transformer_block.3} parent=11 // pred_fallthru
          _
      $region12: #{moae_transformer_block.3} parent=5 // pred_fallthru
        _
      %p289 = scmp.lt.s32.totalorder %s32, 8
      // Predicated region
      $region21: #{moae_transformer_block.3} parent=5 // pred_check
        %p290 = pneg %p289
      $region22: #{moae_transformer_block.3} parent=5 // pred_check_branch
        %292 = sbr.rel (%p290) target = $region24
      $region23: #{moae_transformer_block.3} parent=5 // pred_region
        // Predicated region
        $region25: #{moae_transformer_block.3} parent=23 // pred_check
          %p293 = pneg %p64
        $region26: #{moae_transformer_block.3} parent=23 // pred_check_branch
          %295 = sbr.rel (%p293) target = $region28
        $region27: #{moae_transformer_block.3} parent=23 // pred_region
          %p296 = scmp.lt.s32.totalorder %s39, 1
          %s297 = scalar_select %p296, %s39, 1
          %s298 = smul.addr %s297, 8
          %s299 = scalar_lea.vmem %s1, %s298
        $region28: #{moae_transformer_block.3} parent=23 // pred_fallthru
          _
        // Predicated region
        $region29: #{moae_transformer_block.3} parent=23 // pred_check
          %p300 = pneg %p90
        $region30: #{moae_transformer_block.3} parent=23 // pred_check_branch
          %302 = sbr.rel (%p300) target = $region32
        $region31: #{moae_transformer_block.3} parent=23 // pred_region
          %p303 = scmp.lt.s32.totalorder %s39, 1
          %s304 = scalar_select %p303, %s39, 1
          %s305 = smul.addr %s304, 8
          %s306 = scalar_lea.vmem %s2, %s305
        $region32: #{moae_transformer_block.3} parent=23 // pred_fallthru
          _
        // Predicated region
        $region33: #{moae_transformer_block.3} parent=23 // pred_check
          %p307 = pneg %p116
        $region34: #{moae_transformer_block.3} parent=23 // pred_check_branch
          %309 = sbr.rel (%p307) target = $region36
        $region35: #{moae_transformer_block.3} parent=23 // pred_region
          %s310 = sand.u32 %s106, 1
          %s311 = scalar_lea.sflag [#allocation6], %s310
          %s312 = sand.u32 %s106, 1
          %s313 = smul.addr %s312, 16
          %s314 = scalar_lea.vmem [#allocation5], %s313
          %316 = vsyncadd %s311, 0
          %s317 = smul.addr %s40, 4
          %s318 = smul.addr %s317, 4
          %s319 = scalar_lea.hbm %s3, %s318
          %s320 = sshll.u32 %s319, 4
          %s321 = int_to_ptr.hbm [resolvable:$true] %s320
          %s322 = sshll.u32 %s314, 4
          %s323 = int_to_ptr.vmem [resolvable:$true] %s322
          %328 = dma.hbm_to_vmem [thread:$0]  %s321, 256, %s323, %s311, 64, 64, 4
        $region36: #{moae_transformer_block.3} parent=23 // pred_fallthru
          _
        // Predicated region
        $region37: #{moae_transformer_block.3} parent=23 // pred_check
          %p329 = pneg %p142
        $region38: #{moae_transformer_block.3} parent=23 // pred_check_branch
          %331 = sbr.rel (%p329) target = $region40
        $region39: #{moae_transformer_block.3} parent=23 // pred_region
          %p332 = scmp.lt.s32.totalorder %s40, 3
          %s333 = scalar_select %p332, %s40, 3
          %s334 = scalar_lea.vmem %s4, %s333
        $region40: #{moae_transformer_block.3} parent=23 // pred_fallthru
          _
        // Predicated region
        $region41: #{moae_transformer_block.3} parent=23 // pred_check
          %p335 = pneg %p168
        $region42: #{moae_transformer_block.3} parent=23 // pred_check_branch
          %337 = sbr.rel (%p335) target = $region44
        $region43: #{moae_transformer_block.3} parent=23 // pred_region
          %s338 = sand.u32 %s158, 1
          %s339 = scalar_lea.sflag [#allocation9], %s338
          %s340 = sand.u32 %s158, 1
          %s341 = smul.addr %s340, 16
          %s342 = scalar_lea.vmem [#allocation8], %s341
          %344 = vsyncadd %s339, 0
          %s345 = smul.addr %s40, 4
          %s346 = smul.addr %s345, 4
          %s347 = scalar_lea.hbm %s5, %s346
          %s348 = sshll.u32 %s347, 4
          %s349 = int_to_ptr.hbm [resolvable:$true] %s348
          %s350 = sshll.u32 %s342, 4
          %s351 = int_to_ptr.vmem [resolvable:$true] %s350
          %356 = dma.hbm_to_vmem [thread:$0]  %s349, 256, %s351, %s339, 64, 64, 4
        $region44: #{moae_transformer_block.3} parent=23 // pred_fallthru
          _
        // Predicated region
        $region45: #{moae_transformer_block.3} parent=23 // pred_check
          %p357 = pneg %p194
        $region46: #{moae_transformer_block.3} parent=23 // pred_check_branch
          %359 = sbr.rel (%p357) target = $region48
        $region47: #{moae_transformer_block.3} parent=23 // pred_region
          %p360 = scmp.lt.s32.totalorder %s40, 3
          %s361 = scalar_select %p360, %s40, 3
          %s362 = scalar_lea.vmem %s6, %s361
        $region48: #{moae_transformer_block.3} parent=23 // pred_fallthru
          _
      $region24: #{moae_transformer_block.3} parent=5 // pred_fallthru
        _
      %p363 = scmp.le.s32.totalorder 1, %s32
      %p364 = scmp.lt.s32.totalorder %s32, 9
      %p365 = pnand %p363, %p364
      %p366 = pneg %p365
      // Predicated region
      $region49: #{moae_transformer_block.3} parent=5 // pred_check
        _
      $region50: #{moae_transformer_block.3} parent=5 // pred_check_branch
        %368 = sbr.rel (%p365) target = $region52
      $region51: #{moae_transformer_block.3} parent=5 // pred_region
        %s369 = ssub.s32 %s32, 1
        %s370 = sand.u32 %s109, 1
        %s371 = scalar_lea.sflag [#allocation6], %s370
        %s372 = sand.u32 %s109, 1
        %s373 = smul.addr %s372, 16
        %s374 = scalar_lea.vmem [#allocation5], %s373
        // Predicated region
        $region53: #{moae_transformer_block.3} parent=51 // pred_check
          %p375 = pneg %p122
        $region54: #{moae_transformer_block.3} parent=51 // pred_check_branch
          %377 = sbr.rel (%p375) target = $region56
        $region55: #{moae_transformer_block.3} parent=51 // pred_region
          %379 = dma.done %s371, 256
        $region56: #{moae_transformer_block.3} parent=51 // pred_fallthru
          _
        %s380 = sand.u32 %s161, 1
        %s381 = scalar_lea.sflag [#allocation9], %s380
        %s382 = sand.u32 %s161, 1
        %s383 = smul.addr %s382, 16
        %s384 = scalar_lea.vmem [#allocation8], %s383
        // Predicated region
        $region57: #{moae_transformer_block.3} parent=51 // pred_check
          %p385 = pneg %p174
        $region58: #{moae_transformer_block.3} parent=51 // pred_check_branch
          %387 = sbr.rel (%p385) target = $region60
        $region59: #{moae_transformer_block.3} parent=51 // pred_region
          %389 = dma.done %s381, 256
        $region60: #{moae_transformer_block.3} parent=51 // pred_fallthru
          _
        %p390 = scmp.lt.s32.totalorder %s41, 1
        %s391 = scalar_select %p390, %s41, 1
        %s392 = smul.addr %s391, 8
        %s393 = scalar_lea.vmem %s1, %s392
        %p394 = pneg %p70
        %p395 = pneg %p67
        %p396 = scmp.lt.s32.totalorder %s41, 1
        %s397 = scalar_select %p396, %s41, 1
        %s398 = smul.addr %s397, 8
        %s399 = scalar_lea.vmem %s2, %s398
        %p400 = pneg %p96
        %p401 = pneg %p93
        %s402 = sand.u32 %s109, 1
        %s403 = scalar_lea.sflag [#allocation6], %s402
        %s404 = sand.u32 %s109, 1
        %s405 = smul.addr %s404, 16
        %s406 = scalar_lea.vmem [#allocation5], %s405
        %p407 = pneg %p122
        %p408 = pneg %p119
        %p409 = scmp.lt.s32.totalorder %s42, 3
        %s410 = scalar_select %p409, %s42, 3
        %s411 = scalar_lea.vmem %s4, %s410
        %p412 = pneg %p148
        %p413 = pneg %p145
        %s414 = sand.u32 %s161, 1
        %s415 = scalar_lea.sflag [#allocation9], %s414
        %s416 = sand.u32 %s161, 1
        %s417 = smul.addr %s416, 16
        %s418 = scalar_lea.vmem [#allocation8], %s417
        %p419 = pneg %p174
        %p420 = pneg %p171
        %p421 = scmp.lt.s32.totalorder %s42, 3
        %s422 = scalar_select %p421, %s42, 3
        %s423 = scalar_lea.vmem %s6, %s422
        %p424 = pneg %p200
        %p425 = pneg %p197
        %p426 = pneg %p221
        %p427 = pneg %p218
        %p428 = pneg %p242
        %p429 = pneg %p239
        %p430 = pneg %p268
        %p431 = pneg %p265
        %s432 = sand.u32 %s255, 1
        %s433 = scalar_lea.sflag [#allocation7], %s432
        %s434 = sand.u32 %s255, 1
        %s435 = smul.addr %s434, 8
        %s436 = scalar_lea.vmem [#allocation10], %s435
        %p437 = scmp.lt.s32.totalorder %s41, 1
        %s438 = scalar_select %p437, %s41, 1
        %s439 = smul.addr %s438, 8
        %s440 = scalar_lea.vmem %s1, %s439
        %p441 = scmp.lt.s32.totalorder %s41, 1
        %s442 = scalar_select %p441, %s41, 1
        %s443 = smul.addr %s442, 8
        %s444 = scalar_lea.vmem %s2, %s443
        %p445 = scmp.lt.s32.totalorder %s42, 3
        %s446 = scalar_select %p445, %s42, 3
        %s447 = scalar_lea.vmem %s4, %s446
        %p448 = scmp.lt.s32.totalorder %s42, 3
        %s449 = scalar_select %p448, %s42, 3
        %s450 = scalar_lea.vmem %s6, %s449
        %v452 = vld [vmem:[%s440] sm:$0xff]
        %p453 = scmp.eq.s32.totalorder %s42, 0
        // Predicated region
        $region61: #{moae_transformer_block.3} parent=51 // pred_check
          %p454 = pneg %p453
        $region62: #{moae_transformer_block.3} parent=51 // pred_check_branch
          %456 = sbr.rel (%p454) target = $region64
        $region63: #{moae_transformer_block.3} parent=51 // pred_region
          %vm457 = vcmask 261120
          %458 = vst.msk [vmem:[#allocation2] sm:$0xff] %vm457, 0.0
        $region64: #{moae_transformer_block.3} parent=51 // pred_fallthru
          _
        %s459 = sshra.s32 %s42, 7
        %s460 = sand.u32 %s42, 127
        %s461 = sadd.s32 %s459, %s41
        %s462 = smul.u32 %s461, 128
        %s463 = sshra.s32 %s42, 7
        %s464 = sand.u32 %s42, 127
        %s465 = sadd.s32 %s462, %s464
        %s466 = sld [smem:[#allocation4 + %s465]]
        %p467 = scmp.ne.s32.totalorder %s466, 0
        // Predicated region
        $region65: #{moae_transformer_block.3} parent=51 // pred_check
          %p468 = pneg %p467
        $region66: #{moae_transformer_block.3} parent=51 // pred_check_branch
          %470 = sbr.rel (%p468) target = $region68
        $region67: #{moae_transformer_block.3} parent=51 // pred_region
          %v471 = vld [vmem:[%s444] sm:$0xff]
          %v472 = vlaneseq
          %v473 = vand.u32 %v472, 127
          %v474 = vstv %s42
          %vm475 = vcmp.eq.s32.totalorder %v473, %v474
          %v476 = vsel %vm475, 1, 0
          %v477 = vcvt.s32.f32 %v476
          %v478 = vmul.f32 %v471, %v477
          %vm479 = vcmask 31744
          %v480 = vsel %vm479, %v478, 0.0
          %481 = vadd.xlane.f32.xlu0 %v480
          %v482 = vpop.xlane.xlu0 %481
          %v483 = vld [vmem:[%s374] sm:$0xf]
          %v484 = vld [vmem:[%s374 + $0x4] sm:$0xf]
          %v485 = vld [vmem:[%s374 + $0x8] sm:$0xf]
          %v486 = vld [vmem:[%s374 + $0xc] sm:$0xf]
          %v487 = vld [vmem:[%s447] sm:$0x1]
          %v488 = vld [vmem:[%s384] sm:$0xf]
          %v489 = vld [vmem:[%s384 + $0x4] sm:$0xf]
          %v490 = vld [vmem:[%s384 + $0x8] sm:$0xf]
          %v491 = vld [vmem:[%s384 + $0xc] sm:$0xf]
          %v492 = vld [vmem:[%s450] sm:$0x1]
          %v493 = vpack.c.bf16 %v452, %v452
          %v495 = vperm.slane %v487, 0
          %v501 = vunpack.c.l.b16 %v483
          %v502 = vunpack.c.l.b16 %v484
          %v503 = vunpack.c.l.b16 %v485
          %v504 = vunpack.c.l.b16 %v486
          %v505 = vpack.c.b16 %v502, %v501
          %v506 = vpack.c.b16 %v504, %v503
          %vm509 = vcmask 261120
          %v511 = vsel %vm509, %v493, 0
          %513 = vmatpush.bf16.msra.mxu0 0
          %514 = vmatpush.bf16.msra.mxu0 0
          %515 = vmatpush.bf16.msra.mxu0 0
          %516 = vmatpush.bf16.msra.mxu0 0
          %517 = vmatpush.bf16.msra.mxu0 0
          %518 = vmatpush.bf16.msra.mxu0 0
          %519 = vmatpush.bf16.msra.mxu0 %v506
          %520 = vmatpush.bf16.msra.mxu0 %v505
          %521 = vmatmul.bf16.gmra.mxu0 %v511
          %v522 = vpop.f32.mrf.mxu0
          %v523 = vadd.f32 %v495, %v522
          %v524 = vpop.f32.mrf.mxu0
          %525 = vdwg.mxu0
          %v526 = vpack.c.bf16 %v523, %v523
          %528 = vrot.lane.b32.xlu0 %v526, 112
          %v529 = vpop.permute.xlu0 %528
          %v530 = vunpack.c.l.b16 %v526
          %v531 = vpack.c.b16 %v530, %v530
          %532 = vrot.lane.b32.xlu0 %v531, 96
          %v533 = vpop.permute.xlu0 %532
          %vm534 = vcmask 130048
          %v536 = vsel %vm534, %v526, 0
          %v539 = vsel %vm534, %v533, 0
          %541 = vmatpush.bf16.xpose.msra.mxu0 0
          %542 = vmatpush.bf16.xpose.msra.mxu0 0
          %543 = vmatpush.bf16.xpose.msra.mxu0 0
          %544 = vmatpush.bf16.xpose.msra.mxu0 0
          %545 = vmatpush.bf16.xpose.msra.mxu0 0
          %546 = vmatpush.bf16.xpose.msra.mxu0 0
          %547 = vmatpush.bf16.xpose.msra.mxu0 0
          %548 = vmatpush.bf16.xpose.msra.mxu0 %v539
          %549 = vmatmul.bf16.gmra.mxu0 %v536
          %v550 = vpop.f32.mrf.mxu0
          %v551 = vadd.f32 0.0, %v550
          %v552 = vpop.f32.mrf.mxu0
          %553 = vdwg.mxu0
          %v554 = vunpack.c.l.b16 %v529
          %v555 = vpack.c.b16 %v554, %v554
          %556 = vrot.lane.b32.xlu0 %v555, 96
          %v557 = vpop.permute.xlu0 %556
          %v559 = vsel %vm534, %v529, 0
          %v562 = vsel %vm534, %v557, 0
          %564 = vmatpush.bf16.xpose.msra.mxu0 0
          %565 = vmatpush.bf16.xpose.msra.mxu0 0
          %566 = vmatpush.bf16.xpose.msra.mxu0 0
          %567 = vmatpush.bf16.xpose.msra.mxu0 0
          %568 = vmatpush.bf16.xpose.msra.mxu0 0
          %569 = vmatpush.bf16.xpose.msra.mxu0 0
          %570 = vmatpush.bf16.xpose.msra.mxu0 0
          %571 = vmatpush.bf16.xpose.msra.mxu0 %v562
          %572 = vmatmul.bf16.gmra.mxu0 %v559
          %v573 = vpop.f32.mrf.mxu0
          %v574 = vadd.f32 0.0, %v573
          %v575 = vpop.f32.mrf.mxu0
          %576 = vdwg.mxu0
          %v577 = vmul.f32 %v551, 0.25
          %v578 = vmul.f32 %v574, 0.25
          %vm579 = vcmask 64512
          %v580 = vsel %vm579, %v577, -inf
          %581 = vmax.xlane.f32.xlu0 %v580
          %v582 = vpop.xlane.xlu0 %581
          %v583 = vsel %vm579, %v578, -inf
          %584 = vmax.xlane.f32.xlu0 %v583
          %v585 = vpop.xlane.xlu0 %584
          %v586 = vsub.f32 %v577, %v582
          %v587 = vsub.f32 %v578, %v585
          %v588 = vmul.f32 %v586, 1.442695
          %v589 = vpow.pop %v588
          %v590 = vmul.f32 %v587, 1.442695
          %v591 = vpow.pop %v590
          %v592 = vsel %vm579, %v589, 0.0
          %593 = vadd.xlane.f32.xlu0 %v592
          %v594 = vpop.xlane.xlu0 %593
          %v595 = vsel %vm579, %v591, 0.0
          %596 = vadd.xlane.f32.xlu0 %v595
          %v597 = vpop.xlane.xlu0 %596
          %v598 = vrcp.pop %v594
          %v599 = vrcp.pop %v597
          %v600 = vmul.f32 %v589, %v598
          %v601 = vmul.f32 %v591, %v599
          %v602 = vpack.c.bf16 %v600, %v600
          %v603 = vpack.c.bf16 %v601, %v601
          %604 = vrot.lane.b32.xlu0 %v531, 64
          %v605 = vpop.permute.xlu0 %604
          %v607 = vsel %vm579, %v602, 0
          %vm609 = vcmask 1043456
          %v611 = vsel %vm609, %v605, 0
          %613 = vmatpush.bf16.msra.mxu0 0
          %614 = vmatpush.bf16.msra.mxu0 0
          %615 = vmatpush.bf16.msra.mxu0 0
          %616 = vmatpush.bf16.msra.mxu0 0
          %617 = vmatpush.bf16.msra.mxu0 0
          %618 = vmatpush.bf16.msra.mxu0 0
          %619 = vmatpush.bf16.msra.mxu0 0
          %620 = vmatpush.bf16.msra.mxu0 %v611
          %621 = vmatmul.bf16.gmra.mxu0 %v607
          %v622 = vpop.f32.mrf.mxu0
          %v623 = vadd.f32 0.0, %v622
          %v624 = vpop.f32.mrf.mxu0
          %625 = vdwg.mxu0
          %626 = vrot.lane.b32.xlu0 %v555, 64
          %v627 = vpop.permute.xlu0 %626
          %v629 = vsel %vm579, %v603, 0
          %v632 = vsel %vm609, %v627, 0
          %634 = vmatpush.bf16.msra.mxu0 0
          %635 = vmatpush.bf16.msra.mxu0 0
          %636 = vmatpush.bf16.msra.mxu0 0
          %637 = vmatpush.bf16.msra.mxu0 0
          %638 = vmatpush.bf16.msra.mxu0 0
          %639 = vmatpush.bf16.msra.mxu0 0
          %640 = vmatpush.bf16.msra.mxu0 0
          %641 = vmatpush.bf16.msra.mxu0 %v632
          %642 = vmatmul.bf16.gmra.mxu0 %v629
          %v643 = vpop.f32.mrf.mxu0
          %v644 = vadd.f32 0.0, %v643
          %v645 = vpop.f32.mrf.mxu0
          %646 = vdwg.mxu0
          %648 = vrot.lane.b32.xlu0 %v644, 16
          %v649 = vpop.permute.xlu0 %648
          %v651 = vsel %vm534, %v623, %v649
          %v652 = vpack.c.bf16 %v651, %v651
          %v654 = vperm.slane %v492, 0
          %v660 = vunpack.c.l.b16 %v488
          %v661 = vunpack.c.l.b16 %v489
          %v662 = vunpack.c.l.b16 %v490
          %v663 = vunpack.c.l.b16 %v491
          %v664 = vpack.c.b16 %v661, %v660
          %v665 = vpack.c.b16 %v663, %v662
          %v669 = vsel %vm509, %v652, 0
          %671 = vmatpush.bf16.msra.mxu0 0
          %672 = vmatpush.bf16.msra.mxu0 0
          %673 = vmatpush.bf16.msra.mxu0 0
          %674 = vmatpush.bf16.msra.mxu0 0
          %675 = vmatpush.bf16.msra.mxu0 0
          %676 = vmatpush.bf16.msra.mxu0 0
          %677 = vmatpush.bf16.msra.mxu0 %v665
          %678 = vmatpush.bf16.msra.mxu0 %v664
          %679 = vmatmul.bf16.gmra.mxu0 %v669
          %v680 = vpop.f32.mrf.mxu0
          %v681 = vadd.f32 %v654, %v680
          %v682 = vpop.f32.mrf.mxu0
          %683 = vdwg.mxu0
          %v684 = vld [vmem:[#allocation2] sm:$0xff]
          %v685 = vmul.f32 %v482, %v681
          %v686 = vadd.f32 %v684, %v685
          %687 = vst.msk [vmem:[#allocation2] sm:$0xff] %vm509, %v686
        $region68: #{moae_transformer_block.3} parent=51 // pred_fallthru
          _
        %p688 = scmp.eq.s32.totalorder %s42, 3
        // Predicated region
        $region69: #{moae_transformer_block.3} parent=51 // pred_check
          %p689 = pneg %p688
        $region70: #{moae_transformer_block.3} parent=51 // pred_check_branch
          %691 = sbr.rel (%p689) target = $region72
        $region71: #{moae_transformer_block.3} parent=51 // pred_region
          %v692 = vld [vmem:[#allocation2] sm:$0xff]
          %v693 = vadd.f32 %v452, %v692
          %v694 = vld [vmem:[%s7] sm:$0x1]
          %v695 = vld [vmem:[%s8] sm:$0x1]
          %vm696 = vcmask 261120
          %v697 = vsel %vm696, %v693, 0.0
          %698 = vadd.xlane.f32.xlu0 %v697
          %v699 = vpop.xlane.xlu0 %698
          %v700 = vrcp.pop 32.0
          %v701 = vmul.f32 32.0, %v700
          %v702 = vsub.f32 1.0, %v701
          %v703 = vmul.f32 %v700, %v702
          %v704 = vadd.f32 %v700, %v703
          %vm705 = vweird.f32 %v700
          %v706 = vsel %vm705, %v700, %v704
          %v707 = vmul.f32 %v699, %v706
          %v708 = vsub.f32 %v693, %v707
          %v709 = vmul.f32 %v708, %v708
          %v710 = vsel %vm696, %v709, 0.0
          %711 = vadd.xlane.f32.xlu0 %v710
          %v712 = vpop.xlane.xlu0 %711
          %v713 = vmul.f32 %v712, %v706
          %v714 = vadd.f32 %v713, 1e-05
          %v715 = vrsqrt.pop %v714
          %v716 = vmul.f32 %v715, %v714
          %v717 = vmul.f32 %v716, %v715
          %v718 = vmul.f32 0.5, %v717
          %v719 = vsub.f32 1.5, %v718
          %v720 = vmul.f32 %v715, %v719
          %vm721 = vweird.f32 %v714
          %vm722 = vweird.f32 %v715
          %vm723 = vmor %vm721, %vm722
          %v724 = vsel %vm723, %v715, %v720
          %v725 = vmul.f32 %v708, %v724
          %v727 = vperm.slane %v694, 0
          %v729 = vmul.f32 %v725, %v727
          %v731 = vperm.slane %v695, 0
          %v733 = vadd.f32 %v729, %v731
          %734 = vst.msk [vmem:[%s436] sm:$0xff] %vm696, %v733
        $region72: #{moae_transformer_block.3} parent=51 // pred_fallthru
          _
        %s735 = sand.u32 %s255, 1
        %s736 = scalar_lea.sflag [#allocation7], %s735
        %s737 = sand.u32 %s255, 1
        %s738 = smul.addr %s737, 8
        %s739 = scalar_lea.vmem [#allocation10], %s738
        // Predicated region
        $region73: #{moae_transformer_block.3} parent=51 // pred_check
          %p740 = pneg %p265
        $region74: #{moae_transformer_block.3} parent=51 // pred_check_branch
          %742 = sbr.rel (%p740) target = $region76
        $region75: #{moae_transformer_block.3} parent=51 // pred_region
          %744 = vsyncadd %s736, 0
          %s745 = smul.addr %s41, 8
          %s746 = scalar_lea.hbm %s9, %s745
          %s748 = sshll.u32 %s739, 4
          %s749 = int_to_ptr.vmem [resolvable:$true] %s748
          %s750 = sshll.u32 %s746, 4
          %s751 = int_to_ptr.hbm [resolvable:$true] %s750
          %753 = dma.vmem_to_hbm [thread:$0]  %s749, 128, %s751, %s736
        $region76: #{moae_transformer_block.3} parent=51 // pred_fallthru
          _
      $region52: #{moae_transformer_block.3} parent=5 // pred_fallthru
        _
      %p754 = scmp.le.s32.totalorder 2, %s32
      // Predicated region
      $region77: #{moae_transformer_block.3} parent=5 // pred_check
        %p755 = pneg %p754
      $region78: #{moae_transformer_block.3} parent=5 // pred_check_branch
        %757 = sbr.rel (%p755) target = $region80
      $region79: #{moae_transformer_block.3} parent=5 // pred_region
        %s758 = ssub.s32 %s32, 2
        // Predicated region
        $region81: #{moae_transformer_block.3} parent=79 // pred_check
          %p759 = pneg %p271
        $region82: #{moae_transformer_block.3} parent=79 // pred_check_branch
          %761 = sbr.rel (%p759) target = $region84
        $region83: #{moae_transformer_block.3} parent=79 // pred_region
          %s762 = sand.u32 %s256, 1
          %s763 = scalar_lea.sflag [#allocation7], %s762
          %s764 = sand.u32 %s256, 1
          %s765 = smul.addr %s764, 8
          %s766 = scalar_lea.vmem [#allocation10], %s765
          %768 = dma.done %s763, 128
        $region84: #{moae_transformer_block.3} parent=79 // pred_fallthru
          _
      $region80: #{moae_transformer_block.3} parent=5 // pred_fallthru
        _
    $region6: #{moae_transformer_block.3} parent=1 // loop_footer
      %s36 = sadd.s32 1, %s32
    $region7: #{moae_transformer_block.3} parent=1 // loop_footer_branch
      %31 = sbr.rel target = $region3
    $region8: #{moae_transformer_block.3} parent=1 // loop_exit
      _
    %769 = vsyncpa [#allocation6], 1
    %s770 = scalar_lea.sflag [#allocation6], 1
    %771 = vsyncpa %s770, 1
    %772 = vsyncpa [#allocation9], 1
    %s773 = scalar_lea.sflag [#allocation9], 1
    %774 = vsyncpa %s773, 1
    %775 = vsyncpa [#allocation7], 1
    %s776 = scalar_lea.sflag [#allocation7], 1
    %777 = vsyncpa %s776, 1

// kernel: moae_transformer_block.2
$region0: #{moae_transformer_block.2}
  #allocation0 [shape = 'u32[]', space=smem, size = 0x4, offset = 0x4, fixed_abs, tag = 'smem constant byte address 0x4 - core index']
  #allocation1 [shape = 'u32[72,128]{1,0:T(1,128)}', space=vmem, size = 0x9000, scoped, tag = 'internal scratch']
  %s0 = inlined_call_operand.vmem [shape: f32[2,8,32], index: 0, kind: input, shape index: {}]
  %s1 = inlined_call_operand.vmem [shape: bf16[32,96], index: 1, kind: input, shape index: {}]
  %s2 = inlined_call_operand.vmem [shape: f32[1,96], index: 2, kind: input, shape index: {}]
  %s3 = inlined_call_operand.hbm [shape: bf16[32,32], index: 3, kind: input, shape index: {}]
  %s4 = inlined_call_operand.vmem [shape: f32[1,32], index: 4, kind: input, shape index: {}]
  %s5 = inlined_call_operand.vmem [shape: f32[32,4], index: 5, kind: input, shape index: {}]
  %s6 = inlined_call_operand.vmem [shape: f32[1,32], index: 6, kind: input, shape index: {}]
  %s7 = inlined_call_operand.vmem [shape: f32[1,32], index: 7, kind: input, shape index: {}]
  %s8 = inlined_call_operand.vmem [shape: f32[2,8,32], index: 8, kind: output, shape index: {0}]
  %s9 = inlined_call_operand.vmem [shape: f32[2,8,4], index: 9, kind: output, shape index: {1}]
  %s10 = inlined_call_operand.vmem [shape: f32[2,3,128], index: 10, kind: output, shape index: {2}]
  %11 = xla_tuple %s8, %s9, %s10
  %s12 = sld [smem:[#allocation0]]
  $region85: #{moae_transformer_block.2} parent=0
    _
  %s14 = ssub.s32 1, %s12
  %s15 = scalar_select 0, %s14, %s12
  $region1: #{moae_transformer_block.2} parent=0
    #allocation2 [shape = 'u8[8192]{0}', space=vmem, size = 0x2000, scoped, tag = 'input window, operand 3, single buffered']
    #allocation3 [shape = 's32[2]{0}', space=sflag, size = 0x8, scoped, tag = 'scoped memory for moae_transformer_block.2']
    %16 = vsyncpa [#allocation3], 0
    loop: start=0, step=1, limit=4
    $region2: #{moae_transformer_block.2} parent=1 // loop_pre_header
      _
    $region3: #{moae_transformer_block.2} parent=1 // loop_header
      %s18 = sphi 0, %s22
      %p19 = scmp.ge.s32.totalorder %s18, 4
      %s28 = sphi 0, %s30
      %s31 = sphi 0, %s28
      %s32 = sphi 0, %s31
      %s48 = sphi 0, %s32
      %s52 = sphi 0, %s52
      %s54 = sphi 0, %s52
      %s55 = sphi 0, %s54
      %s69 = sphi 0, %s55
      %s73 = sphi 0, %s73
      %s75 = sphi 0, %s73
      %s76 = sphi 0, %s75
      %s90 = sphi 0, %s76
      %s94 = sphi 0, %s94
      %s96 = sphi 0, %s94
      %s97 = sphi 0, %s96
      %s111 = sphi 0, %s97
      %s115 = sphi 0, %s115
      %s117 = sphi 0, %s115
      %s118 = sphi 0, %s117
      %s132 = sphi 0, %s118
      %s136 = sphi 0, %s136
      %s138 = sphi 0, %s136
      %s139 = sphi 0, %s138
      %s153 = sphi 0, %s139
      %s157 = sphi 0, %s157
      %s159 = sphi 0, %s157
      %s160 = sphi 0, %s159
      %s174 = sphi 0, %s160
      %s178 = sphi 0, %s178
      %s180 = sphi 0, %s178
      %s181 = sphi 0, %s180
      %s195 = sphi 0, %s181
      %s201 = sphi 0, %s203
      %s204 = sphi 0, %s201
      %s205 = sphi 0, %s204
      %s221 = sphi 0, %s205
      %s227 = sphi 0, %s229
      %s230 = sphi 0, %s227
      %s231 = sphi 0, %s230
      %s247 = sphi 0, %s231
      %s253 = sphi 0, %s255
      %s256 = sphi 0, %s253
      %s257 = sphi 0, %s256
      %s273 = sphi 0, %s257
    $region4: #{moae_transformer_block.2} parent=1 // loop_header_branch
      %21 = sbr.rel (%p19) target = $region8
    $region5: #{moae_transformer_block.2} parent=1 // loop_body
      %s23 = ssub.s32 %s18, 1
      %s24 = ssub.s32 %s18, 2
      %s25 = sadd.s32 %s18, 1
      %s26 = ssub.s32 %s18, %s25
      %p27 = scmp.eq.s32.totalorder %s26, 0
      %s29 = sadd.s32 %s28, 1
      %s30 = scalar_select %p27, %s28, %s29
      %p33 = pneg %p27
      %p34 = scmp.eq.s32.totalorder %s18, 1
      %p35 = por %p33, %p34
      %p36 = scmp.ne.s32.totalorder %s28, %s31
      %p37 = scmp.eq.s32.totalorder %s18, 0
      %p38 = por %p36, %p37
      %p39 = scmp.ne.s32.totalorder %s28, %s31
      %p40 = scmp.eq.s32.totalorder %s23, 1
      %p41 = por %p39, %p40
      %p42 = scmp.ne.s32.totalorder %s31, %s32
      %p43 = scmp.eq.s32.totalorder %s23, 0
      %p44 = por %p42, %p43
      %p45 = scmp.ne.s32.totalorder %s31, %s32
      %p46 = scmp.eq.s32.totalorder %s24, 1
      %p47 = por %p45, %p46
      %p49 = scmp.ne.s32.totalorder %s32, %s48
      %p50 = scmp.eq.s32.totalorder %s24, 0
      %p51 = por %p49, %p50
      %s53 = sadd.s32 %s52, 1
      %p56 = scmp.eq.s32.totalorder %s18, 1
      %p57 = scmp.ne.s32.totalorder %s52, %s54
      %p58 = scmp.eq.s32.totalorder %s18, 0
      %p59 = por %p57, %p58
      %p60 = scmp.ne.s32.totalorder %s52, %s54
      %p61 = scmp.eq.s32.totalorder %s23, 1
      %p62 = por %p60, %p61
      %p63 = scmp.ne.s32.totalorder %s54, %s55
      %p64 = scmp.eq.s32.totalorder %s23, 0
      %p65 = por %p63, %p64
      %p66 = scmp.ne.s32.totalorder %s54, %s55
      %p67 = scmp.eq.s32.totalorder %s24, 1
      %p68 = por %p66, %p67
      %p70 = scmp.ne.s32.totalorder %s55, %s69
      %p71 = scmp.eq.s32.totalorder %s24, 0
      %p72 = por %p70, %p71
      %s74 = sadd.s32 %s73, 1
      %p77 = scmp.eq.s32.totalorder %s18, 1
      %p78 = scmp.ne.s32.totalorder %s73, %s75
      %p79 = scmp.eq.s32.totalorder %s18, 0
      %p80 = por %p78, %p79
      %p81 = scmp.ne.s32.totalorder %s73, %s75
      %p82 = scmp.eq.s32.totalorder %s23, 1
      %p83 = por %p81, %p82
      %p84 = scmp.ne.s32.totalorder %s75, %s76
      %p85 = scmp.eq.s32.totalorder %s23, 0
      %p86 = por %p84, %p85
      %p87 = scmp.ne.s32.totalorder %s75, %s76
      %p88 = scmp.eq.s32.totalorder %s24, 1
      %p89 = por %p87, %p88
      %p91 = scmp.ne.s32.totalorder %s76, %s90
      %p92 = scmp.eq.s32.totalorder %s24, 0
      %p93 = por %p91, %p92
      %s95 = sadd.s32 %s94, 1
      %p98 = scmp.eq.s32.totalorder %s18, 1
      %p99 = scmp.ne.s32.totalorder %s94, %s96
      %p100 = scmp.eq.s32.totalorder %s18, 0
      %p101 = por %p99, %p100
      %p102 = scmp.ne.s32.totalorder %s94, %s96
      %p103 = scmp.eq.s32.totalorder %s23, 1
      %p104 = por %p102, %p103
      %p105 = scmp.ne.s32.totalorder %s96, %s97
      %p106 = scmp.eq.s32.totalorder %s23, 0
      %p107 = por %p105, %p106
      %p108 = scmp.ne.s32.totalorder %s96, %s97
      %p109 = scmp.eq.s32.totalorder %s24, 1
      %p110 = por %p108, %p109
      %p112 = scmp.ne.s32.totalorder %s97, %s111
      %p113 = scmp.eq.s32.totalorder %s24, 0
      %p114 = por %p112, %p113
      %s116 = sadd.s32 %s115, 1
      %p119 = scmp.eq.s32.totalorder %s18, 1
      %p120 = scmp.ne.s32.totalorder %s115, %s117
      %p121 = scmp.eq.s32.totalorder %s18, 0
      %p122 = por %p120, %p121
      %p123 = scmp.ne.s32.totalorder %s115, %s117
      %p124 = scmp.eq.s32.totalorder %s23, 1
      %p125 = por %p123, %p124
      %p126 = scmp.ne.s32.totalorder %s117, %s118
      %p127 = scmp.eq.s32.totalorder %s23, 0
      %p128 = por %p126, %p127
      %p129 = scmp.ne.s32.totalorder %s117, %s118
      %p130 = scmp.eq.s32.totalorder %s24, 1
      %p131 = por %p129, %p130
      %p133 = scmp.ne.s32.totalorder %s118, %s132
      %p134 = scmp.eq.s32.totalorder %s24, 0
      %p135 = por %p133, %p134
      %s137 = sadd.s32 %s136, 1
      %p140 = scmp.eq.s32.totalorder %s18, 1
      %p141 = scmp.ne.s32.totalorder %s136, %s138
      %p142 = scmp.eq.s32.totalorder %s18, 0
      %p143 = por %p141, %p142
      %p144 = scmp.ne.s32.totalorder %s136, %s138
      %p145 = scmp.eq.s32.totalorder %s23, 1
      %p146 = por %p144, %p145
      %p147 = scmp.ne.s32.totalorder %s138, %s139
      %p148 = scmp.eq.s32.totalorder %s23, 0
      %p149 = por %p147, %p148
      %p150 = scmp.ne.s32.totalorder %s138, %s139
      %p151 = scmp.eq.s32.totalorder %s24, 1
      %p152 = por %p150, %p151
      %p154 = scmp.ne.s32.totalorder %s139, %s153
      %p155 = scmp.eq.s32.totalorder %s24, 0
      %p156 = por %p154, %p155
      %s158 = sadd.s32 %s157, 1
      %p161 = scmp.eq.s32.totalorder %s18, 1
      %p162 = scmp.ne.s32.totalorder %s157, %s159
      %p163 = scmp.eq.s32.totalorder %s18, 0
      %p164 = por %p162, %p163
      %p165 = scmp.ne.s32.totalorder %s157, %s159
      %p166 = scmp.eq.s32.totalorder %s23, 1
      %p167 = por %p165, %p166
      %p168 = scmp.ne.s32.totalorder %s159, %s160
      %p169 = scmp.eq.s32.totalorder %s23, 0
      %p170 = por %p168, %p169
      %p171 = scmp.ne.s32.totalorder %s159, %s160
      %p172 = scmp.eq.s32.totalorder %s24, 1
      %p173 = por %p171, %p172
      %p175 = scmp.ne.s32.totalorder %s160, %s174
      %p176 = scmp.eq.s32.totalorder %s24, 0
      %p177 = por %p175, %p176
      %s179 = sadd.s32 %s178, 1
      %p182 = scmp.eq.s32.totalorder %s18, 1
      %p183 = scmp.ne.s32.totalorder %s178, %s180
      %p184 = scmp.eq.s32.totalorder %s18, 0
      %p185 = por %p183, %p184
      %p186 = scmp.ne.s32.totalorder %s178, %s180
      %p187 = scmp.eq.s32.totalorder %s23, 1
      %p188 = por %p186, %p187
      %p189 = scmp.ne.s32.totalorder %s180, %s181
      %p190 = scmp.eq.s32.totalorder %s23, 0
      %p191 = por %p189, %p190
      %p192 = scmp.ne.s32.totalorder %s180, %s181
      %p193 = scmp.eq.s32.totalorder %s24, 1
      %p194 = por %p192, %p193
      %p196 = scmp.ne.s32.totalorder %s181, %s195
      %p197 = scmp.eq.s32.totalorder %s24, 0
      %p198 = por %p196, %p197
      %s199 = ssub.s32 %s18, %s25
      %p200 = scmp.eq.s32.totalorder %s199, 0
      %s202 = sadd.s32 %s201, 1
      %s203 = scalar_select %p200, %s201, %s202
      %p206 = pneg %p200
      %p207 = scmp.eq.s32.totalorder %s18, 1
      %p208 = por %p206, %p207
      %p209 = scmp.ne.s32.totalorder %s201, %s204
      %p210 = scmp.eq.s32.totalorder %s18, 0
      %p211 = por %p209, %p210
      %p212 = scmp.ne.s32.totalorder %s201, %s204
      %p213 = scmp.eq.s32.totalorder %s23, 1
      %p214 = por %p212, %p213
      %p215 = scmp.ne.s32.totalorder %s204, %s205
      %p216 = scmp.eq.s32.totalorder %s23, 0
      %p217 = por %p215, %p216
      %p218 = scmp.ne.s32.totalorder %s204, %s205
      %p219 = scmp.eq.s32.totalorder %s24, 1
      %p220 = por %p218, %p219
      %p222 = scmp.ne.s32.totalorder %s205, %s221
      %p223 = scmp.eq.s32.totalorder %s24, 0
      %p224 = por %p222, %p223
      %s225 = ssub.s32 %s18, %s25
      %p226 = scmp.eq.s32.totalorder %s225, 0
      %s228 = sadd.s32 %s227, 1
      %s229 = scalar_select %p226, %s227, %s228
      %p232 = pneg %p226
      %p233 = scmp.eq.s32.totalorder %s18, 1
      %p234 = por %p232, %p233
      %p235 = scmp.ne.s32.totalorder %s227, %s230
      %p236 = scmp.eq.s32.totalorder %s18, 0
      %p237 = por %p235, %p236
      %p238 = scmp.ne.s32.totalorder %s227, %s230
      %p239 = scmp.eq.s32.totalorder %s23, 1
      %p240 = por %p238, %p239
      %p241 = scmp.ne.s32.totalorder %s230, %s231
      %p242 = scmp.eq.s32.totalorder %s23, 0
      %p243 = por %p241, %p242
      %p244 = scmp.ne.s32.totalorder %s230, %s231
      %p245 = scmp.eq.s32.totalorder %s24, 1
      %p246 = por %p244, %p245
      %p248 = scmp.ne.s32.totalorder %s231, %s247
      %p249 = scmp.eq.s32.totalorder %s24, 0
      %p250 = por %p248, %p249
      %s251 = ssub.s32 %s18, %s25
      %p252 = scmp.eq.s32.totalorder %s251, 0
      %s254 = sadd.s32 %s253, 1
      %s255 = scalar_select %p252, %s253, %s254
      %p258 = pneg %p252
      %p259 = scmp.eq.s32.totalorder %s18, 1
      %p260 = por %p258, %p259
      %p261 = scmp.ne.s32.totalorder %s253, %s256
      %p262 = scmp.eq.s32.totalorder %s18, 0
      %p263 = por %p261, %p262
      %p264 = scmp.ne.s32.totalorder %s253, %s256
      %p265 = scmp.eq.s32.totalorder %s23, 1
      %p266 = por %p264, %p265
      %p267 = scmp.ne.s32.totalorder %s256, %s257
      %p268 = scmp.eq.s32.totalorder %s23, 0
      %p269 = por %p267, %p268
      %p270 = scmp.ne.s32.totalorder %s256, %s257
      %p271 = scmp.eq.s32.totalorder %s24, 1
      %p272 = por %p270, %p271
      %p274 = scmp.ne.s32.totalorder %s257, %s273
      %p275 = scmp.eq.s32.totalorder %s24, 0
      %p276 = por %p274, %p275
      %p277 = scmp.le.s32.totalorder 1, %s18
      %p278 = scmp.lt.s32.totalorder %s18, 3
      %p279 = pnand %p277, %p278
      %p280 = pneg %p279
      // Predicated region
      $region9: #{moae_transformer_block.2} parent=5 // pred_check
        _
      $region10: #{moae_transformer_block.2} parent=5 // pred_check_branch
        %282 = sbr.rel (%p279) target = $region12
      $region11: #{moae_transformer_block.2} parent=5 // pred_region
        %s283 = ssub.s32 %s18, 1
        // Predicated region
        $region13: #{moae_transformer_block.2} parent=11 // pred_check
          %p284 = pneg %p65
        $region14: #{moae_transformer_block.2} parent=11 // pred_check_branch
          %286 = sbr.rel (%p284) target = $region16
        $region15: #{moae_transformer_block.2} parent=11 // pred_region
          _
        $region16: #{moae_transformer_block.2} parent=11 // pred_fallthru
          _
        // Predicated region
        $region17: #{moae_transformer_block.2} parent=11 // pred_check
          %p287 = pneg %p86
        $region18: #{moae_transformer_block.2} parent=11 // pred_check_branch
          %289 = sbr.rel (%p287) target = $region20
        $region19: #{moae_transformer_block.2} parent=11 // pred_region
          _
        $region20: #{moae_transformer_block.2} parent=11 // pred_fallthru
          _
        // Predicated region
        $region21: #{moae_transformer_block.2} parent=11 // pred_check
          %p290 = pneg %p107
        $region22: #{moae_transformer_block.2} parent=11 // pred_check_branch
          %292 = sbr.rel (%p290) target = $region24
        $region23: #{moae_transformer_block.2} parent=11 // pred_region
          %294 = vsyncadd [#allocation3], 0
          %s295 = sshll.u32 %s3, 4
          %s296 = int_to_ptr.hbm [resolvable:$true] %s295
          %s297 = sshll.u32 [#allocation2], 4
          %s298 = int_to_ptr.vmem [resolvable:$true] %s297
          %303 = dma.hbm_to_vmem [thread:$0]  %s296, 256, %s298, [#allocation3], 64, 64, 4
        $region24: #{moae_transformer_block.2} parent=11 // pred_fallthru
          _
        // Predicated region
        $region25: #{moae_transformer_block.2} parent=11 // pred_check
          %p304 = pneg %p128
        $region26: #{moae_transformer_block.2} parent=11 // pred_check_branch
          %306 = sbr.rel (%p304) target = $region28
        $region27: #{moae_transformer_block.2} parent=11 // pred_region
          _
        $region28: #{moae_transformer_block.2} parent=11 // pred_fallthru
          _
        // Predicated region
        $region29: #{moae_transformer_block.2} parent=11 // pred_check
          %p307 = pneg %p149
        $region30: #{moae_transformer_block.2} parent=11 // pred_check_branch
          %309 = sbr.rel (%p307) target = $region32
        $region31: #{moae_transformer_block.2} parent=11 // pred_region
          _
        $region32: #{moae_transformer_block.2} parent=11 // pred_fallthru
          _
        // Predicated region
        $region33: #{moae_transformer_block.2} parent=11 // pred_check
          %p310 = pneg %p170
        $region34: #{moae_transformer_block.2} parent=11 // pred_check_branch
          %312 = sbr.rel (%p310) target = $region36
        $region35: #{moae_transformer_block.2} parent=11 // pred_region
          _
        $region36: #{moae_transformer_block.2} parent=11 // pred_fallthru
          _
        // Predicated region
        $region37: #{moae_transformer_block.2} parent=11 // pred_check
          %p313 = pneg %p191
        $region38: #{moae_transformer_block.2} parent=11 // pred_check_branch
          %315 = sbr.rel (%p313) target = $region40
        $region39: #{moae_transformer_block.2} parent=11 // pred_region
          _
        $region40: #{moae_transformer_block.2} parent=11 // pred_fallthru
          _
      $region12: #{moae_transformer_block.2} parent=5 // pred_fallthru
        _
      %p316 = scmp.lt.s32.totalorder %s18, 2
      // Predicated region
      $region41: #{moae_transformer_block.2} parent=5 // pred_check
        %p317 = pneg %p316
      $region42: #{moae_transformer_block.2} parent=5 // pred_check_branch
        %319 = sbr.rel (%p317) target = $region44
      $region43: #{moae_transformer_block.2} parent=5 // pred_region
        // Predicated region
        $region45: #{moae_transformer_block.2} parent=43 // pred_check
          %p320 = pneg %p38
        $region46: #{moae_transformer_block.2} parent=43 // pred_check_branch
          %322 = sbr.rel (%p320) target = $region48
        $region47: #{moae_transformer_block.2} parent=43 // pred_region
          %p323 = scmp.lt.s32.totalorder %s18, 1
          %s324 = scalar_select %p323, %s18, 1
          %s325 = smul.addr %s324, 8
          %s326 = scalar_lea.vmem %s0, %s325
        $region48: #{moae_transformer_block.2} parent=43 // pred_fallthru
          _
      $region44: #{moae_transformer_block.2} parent=5 // pred_fallthru
        _
      %p327 = scmp.le.s32.totalorder 1, %s18
      %p328 = scmp.lt.s32.totalorder %s18, 3
      %p329 = pnand %p327, %p328
      %p330 = pneg %p329
      // Predicated region
      $region49: #{moae_transformer_block.2} parent=5 // pred_check
        _
      $region50: #{moae_transformer_block.2} parent=5 // pred_check_branch
        %332 = sbr.rel (%p329) target = $region52
      $region51: #{moae_transformer_block.2} parent=5 // pred_region
        %s333 = ssub.s32 %s18, 1
        // Predicated region
        $region53: #{moae_transformer_block.2} parent=51 // pred_check
          %p334 = pneg %p107
        $region54: #{moae_transformer_block.2} parent=51 // pred_check_branch
          %336 = sbr.rel (%p334) target = $region56
        $region55: #{moae_transformer_block.2} parent=51 // pred_region
          %338 = dma.done [#allocation3], 256
        $region56: #{moae_transformer_block.2} parent=51 // pred_fallthru
          _
        %p339 = scmp.lt.s32.totalorder %s23, 1
        %s340 = scalar_select %p339, %s23, 1
        %s341 = smul.addr %s340, 8
        %s342 = scalar_lea.vmem %s0, %s341
        %p343 = pneg %p44
        %p344 = pneg %p41
        %p345 = pneg %p65
        %p346 = pneg %p62
        %p347 = pneg %p86
        %p348 = pneg %p83
        %p349 = pneg %p107
        %p350 = pneg %p104
        %p351 = pneg %p128
        %p352 = pneg %p125
        %p353 = pneg %p149
        %p354 = pneg %p146
        %p355 = pneg %p170
        %p356 = pneg %p167
        %p357 = pneg %p191
        %p358 = pneg %p188
        %p359 = pneg %p217
        %p360 = pneg %p214
        %p361 = scmp.lt.s32.totalorder %s23, 1
        %s362 = scalar_select %p361, %s23, 1
        %s363 = smul.addr %s362, 8
        %s364 = scalar_lea.vmem %s8, %s363
        %p365 = pneg %p243
        %p366 = pneg %p240
        %p367 = scmp.lt.s32.totalorder %s23, 1
        %s368 = scalar_select %p367, %s23, 1
        %s369 = smul.addr %s368, 8
        %s370 = scalar_lea.vmem %s9, %s369
        %p371 = pneg %p269
        %p372 = pneg %p266
        %p373 = scmp.lt.s32.totalorder %s23, 1
        %s374 = scalar_select %p373, %s23, 1
        %s375 = smul.addr %s374, 4
        %s376 = scalar_lea.vmem %s10, %s375
        %p377 = scmp.lt.s32.totalorder %s23, 1
        %s378 = scalar_select %p377, %s23, 1
        %s379 = smul.addr %s378, 8
        %s380 = scalar_lea.vmem %s0, %s379
        %p381 = scmp.lt.s32.totalorder %s23, 1
        %s382 = scalar_select %p381, %s23, 1
        %s383 = smul.addr %s382, 8
        %s384 = scalar_lea.vmem %s8, %s383
        %p385 = scmp.lt.s32.totalorder %s23, 1
        %s386 = scalar_select %p385, %s23, 1
        %s387 = smul.addr %s386, 8
        %s388 = scalar_lea.vmem %s9, %s387
        %p389 = scmp.lt.s32.totalorder %s23, 1
        %s390 = scalar_select %p389, %s23, 1
        %s391 = smul.addr %s390, 4
        %s392 = scalar_lea.vmem %s10, %s391
        %v394 = vld [vmem:[%s380] sm:$0xff]
        %v395 = vld [vmem:[%s1] sm:$0xf]
        %v396 = vld [vmem:[%s1 + $0x4] sm:$0xf]
        %v397 = vld [vmem:[%s1 + $0x8] sm:$0xf]
        %v398 = vld [vmem:[%s1 + $0xc] sm:$0xf]
        %v399 = vld [vmem:[%s2] sm:$0x1]
        %v400 = vld [vmem:[#allocation2] sm:$0xf]
        %v401 = vld [vmem:[#allocation2 + $0x4] sm:$0xf]
        %v402 = vld [vmem:[#allocation2 + $0x8] sm:$0xf]
        %v403 = vld [vmem:[#allocation2 + $0xc] sm:$0xf]
        %v404 = vld [vmem:[%s4] sm:$0x1]
        %v405 = vpack.c.bf16 %v394, %v394
        %v407 = vperm.slane %v399, 0
        %v413 = vunpack.c.l.b16 %v395
        %v414 = vunpack.c.l.b16 %v396
        %v415 = vunpack.c.l.b16 %v397
        %v416 = vunpack.c.l.b16 %v398
        %v417 = vpack.c.b16 %v414, %v413
        %v418 = vpack.c.b16 %v416, %v415
        %vm421 = vcmask 261120
        %v423 = vsel %vm421, %v405, 0
        %425 = vmatpush.bf16.msra.mxu0 0
        %426 = vmatpush.bf16.msra.mxu0 0
        %427 = vmatpush.bf16.msra.mxu0 0
        %428 = vmatpush.bf16.msra.mxu0 0
        %429 = vmatpush.bf16.msra.mxu0 0
        %430 = vmatpush.bf16.msra.mxu0 0
        %431 = vmatpush.bf16.msra.mxu0 %v418
        %432 = vmatpush.bf16.msra.mxu0 %v417
        %433 = vmatmul.bf16.gmra.mxu0 %v423
        %v434 = vpop.f32.mrf.mxu0
        %v435 = vadd.f32 %v407, %v434
        %v436 = vpop.f32.mrf.mxu0
        %437 = vdwg.mxu0
        %v438 = vpack.c.bf16 %v435, %v435
        %440 = vrot.lane.b32.xlu0 %v438, 120
        %v441 = vpop.permute.xlu0 %440
        %442 = vrot.lane.b32.xlu0 %v438, 112
        %v443 = vpop.permute.xlu0 %442
        %444 = vrot.lane.b32.xlu0 %v438, 104
        %v445 = vpop.permute.xlu0 %444
        %v446 = vunpack.c.l.b16 %v438
        %v447 = vpack.c.b16 %v446, %v446
        %448 = vrot.lane.b32.xlu0 %v447, 96
        %v449 = vpop.permute.xlu0 %448
        %vm450 = vcmask 64512
        %v452 = vsel %vm450, %v438, 0
        %v455 = vsel %vm450, %v449, 0
        %457 = vmatpush.bf16.xpose.msra.mxu0 0
        %458 = vmatpush.bf16.xpose.msra.mxu0 0
        %459 = vmatpush.bf16.xpose.msra.mxu0 0
        %460 = vmatpush.bf16.xpose.msra.mxu0 0
        %461 = vmatpush.bf16.xpose.msra.mxu0 0
        %462 = vmatpush.bf16.xpose.msra.mxu0 0
        %463 = vmatpush.bf16.xpose.msra.mxu0 0
        %464 = vmatpush.bf16.xpose.msra.mxu0 %v455
        %465 = vmatmul.bf16.gmra.mxu0 %v452
        %v466 = vpop.f32.mrf.mxu0
        %v467 = vadd.f32 0.0, %v466
        %v468 = vpop.f32.mrf.mxu0
        %469 = vdwg.mxu0
        %v470 = vunpack.c.l.b16 %v441
        %v471 = vpack.c.b16 %v470, %v470
        %472 = vrot.lane.b32.xlu0 %v471, 96
        %v473 = vpop.permute.xlu0 %472
        %v475 = vsel %vm450, %v441, 0
        %v478 = vsel %vm450, %v473, 0
        %480 = vmatpush.bf16.xpose.msra.mxu0 0
        %481 = vmatpush.bf16.xpose.msra.mxu0 0
        %482 = vmatpush.bf16.xpose.msra.mxu0 0
        %483 = vmatpush.bf16.xpose.msra.mxu0 0
        %484 = vmatpush.bf16.xpose.msra.mxu0 0
        %485 = vmatpush.bf16.xpose.msra.mxu0 0
        %486 = vmatpush.bf16.xpose.msra.mxu0 0
        %487 = vmatpush.bf16.xpose.msra.mxu0 %v478
        %488 = vmatmul.bf16.gmra.mxu0 %v475
        %v489 = vpop.f32.mrf.mxu0
        %v490 = vadd.f32 0.0, %v489
        %v491 = vpop.f32.mrf.mxu0
        %492 = vdwg.mxu0
        %v493 = vunpack.c.l.b16 %v443
        %v494 = vpack.c.b16 %v493, %v493
        %495 = vrot.lane.b32.xlu0 %v494, 96
        %v496 = vpop.permute.xlu0 %495
        %v498 = vsel %vm450, %v443, 0
        %v501 = vsel %vm450, %v496, 0
        %503 = vmatpush.bf16.xpose.msra.mxu0 0
        %504 = vmatpush.bf16.xpose.msra.mxu0 0
        %505 = vmatpush.bf16.xpose.msra.mxu0 0
        %506 = vmatpush.bf16.xpose.msra.mxu0 0
        %507 = vmatpush.bf16.xpose.msra.mxu0 0
        %508 = vmatpush.bf16.xpose.msra.mxu0 0
        %509 = vmatpush.bf16.xpose.msra.mxu0 0
        %510 = vmatpush.bf16.xpose.msra.mxu0 %v501
        %511 = vmatmul.bf16.gmra.mxu0 %v498
        %v512 = vpop.f32.mrf.mxu0
        %v513 = vadd.f32 0.0, %v512
        %v514 = vpop.f32.mrf.mxu0
        %515 = vdwg.mxu0
        %v516 = vunpack.c.l.b16 %v445
        %v517 = vpack.c.b16 %v516, %v516
        %518 = vrot.lane.b32.xlu0 %v517, 96
        %v519 = vpop.permute.xlu0 %518
        %v521 = vsel %vm450, %v445, 0
        %v524 = vsel %vm450, %v519, 0
        %526 = vmatpush.bf16.xpose.msra.mxu0 0
        %527 = vmatpush.bf16.xpose.msra.mxu0 0
        %528 = vmatpush.bf16.xpose.msra.mxu0 0
        %529 = vmatpush.bf16.xpose.msra.mxu0 0
        %530 = vmatpush.bf16.xpose.msra.mxu0 0
        %531 = vmatpush.bf16.xpose.msra.mxu0 0
        %532 = vmatpush.bf16.xpose.msra.mxu0 0
        %533 = vmatpush.bf16.xpose.msra.mxu0 %v524
        %534 = vmatmul.bf16.gmra.mxu0 %v521
        %v535 = vpop.f32.mrf.mxu0
        %v536 = vadd.f32 0.0, %v535
        %v537 = vpop.f32.mrf.mxu0
        %538 = vdwg.mxu0
        %v539 = vmul.f32 %v467, 0.35355338
        %v540 = vmul.f32 %v490, 0.35355338
        %v541 = vmul.f32 %v513, 0.35355338
        %v542 = vmul.f32 %v536, 0.35355338
        %v543 = vsel %vm450, %v539, -inf
        %544 = vmax.xlane.f32.xlu0 %v543
        %v545 = vpop.xlane.xlu0 %544
        %v546 = vsel %vm450, %v540, -inf
        %547 = vmax.xlane.f32.xlu0 %v546
        %v548 = vpop.xlane.xlu0 %547
        %v549 = vsel %vm450, %v541, -inf
        %550 = vmax.xlane.f32.xlu0 %v549
        %v551 = vpop.xlane.xlu0 %550
        %v552 = vsel %vm450, %v542, -inf
        %553 = vmax.xlane.f32.xlu0 %v552
        %v554 = vpop.xlane.xlu0 %553
        %v555 = vsub.f32 %v539, %v545
        %v556 = vsub.f32 %v540, %v548
        %v557 = vsub.f32 %v541, %v551
        %v558 = vsub.f32 %v542, %v554
        %v559 = vmul.f32 %v555, 1.442695
        %v560 = vpow.pop %v559
        %v561 = vmul.f32 %v556, 1.442695
        %v562 = vpow.pop %v561
        %v563 = vmul.f32 %v557, 1.442695
        %v564 = vpow.pop %v563
        %v565 = vmul.f32 %v558, 1.442695
        %v566 = vpow.pop %v565
        %v567 = vsel %vm450, %v560, 0.0
        %568 = vadd.xlane.f32.xlu0 %v567
        %v569 = vpop.xlane.xlu0 %568
        %v570 = vsel %vm450, %v562, 0.0
        %571 = vadd.xlane.f32.xlu0 %v570
        %v572 = vpop.xlane.xlu0 %571
        %v573 = vsel %vm450, %v564, 0.0
        %574 = vadd.xlane.f32.xlu0 %v573
        %v575 = vpop.xlane.xlu0 %574
        %v576 = vsel %vm450, %v566, 0.0
        %577 = vadd.xlane.f32.xlu0 %v576
        %v578 = vpop.xlane.xlu0 %577
        %v579 = vrcp.pop %v569
        %v580 = vrcp.pop %v572
        %v581 = vrcp.pop %v575
        %v582 = vrcp.pop %v578
        %v583 = vmul.f32 %v560, %v579
        %v584 = vmul.f32 %v562, %v580
        %v585 = vmul.f32 %v564, %v581
        %v586 = vmul.f32 %v566, %v582
        %v587 = vpack.c.bf16 %v583, %v583
        %v588 = vpack.c.bf16 %v584, %v584
        %v589 = vpack.c.bf16 %v585, %v585
        %v590 = vpack.c.bf16 %v586, %v586
        %591 = vrot.lane.b32.xlu0 %v447, 64
        %v592 = vpop.permute.xlu0 %591
        %v594 = vsel %vm450, %v587, 0
        %vm596 = vcmask 1043456
        %v598 = vsel %vm596, %v592, 0
        %600 = vmatpush.bf16.msra.mxu0 0
        %601 = vmatpush.bf16.msra.mxu0 0
        %602 = vmatpush.bf16.msra.mxu0 0
        %603 = vmatpush.bf16.msra.mxu0 0
        %604 = vmatpush.bf16.msra.mxu0 0
        %605 = vmatpush.bf16.msra.mxu0 0
        %606 = vmatpush.bf16.msra.mxu0 0
        %607 = vmatpush.bf16.msra.mxu0 %v598
        %608 = vmatmul.bf16.gmra.mxu0 %v594
        %v609 = vpop.f32.mrf.mxu0
        %v610 = vadd.f32 0.0, %v609
        %v611 = vpop.f32.mrf.mxu0
        %612 = vdwg.mxu0
        %613 = vrot.lane.b32.xlu0 %v471, 64
        %v614 = vpop.permute.xlu0 %613
        %v616 = vsel %vm450, %v588, 0
        %v619 = vsel %vm596, %v614, 0
        %621 = vmatpush.bf16.msra.mxu0 0
        %622 = vmatpush.bf16.msra.mxu0 0
        %623 = vmatpush.bf16.msra.mxu0 0
        %624 = vmatpush.bf16.msra.mxu0 0
        %625 = vmatpush.bf16.msra.mxu0 0
        %626 = vmatpush.bf16.msra.mxu0 0
        %627 = vmatpush.bf16.msra.mxu0 0
        %628 = vmatpush.bf16.msra.mxu0 %v619
        %629 = vmatmul.bf16.gmra.mxu0 %v616
        %v630 = vpop.f32.mrf.mxu0
        %v631 = vadd.f32 0.0, %v630
        %v632 = vpop.f32.mrf.mxu0
        %633 = vdwg.mxu0
        %634 = vrot.lane.b32.xlu0 %v494, 64
        %v635 = vpop.permute.xlu0 %634
        %v637 = vsel %vm450, %v589, 0
        %v640 = vsel %vm596, %v635, 0
        %642 = vmatpush.bf16.msra.mxu0 0
        %643 = vmatpush.bf16.msra.mxu0 0
        %644 = vmatpush.bf16.msra.mxu0 0
        %645 = vmatpush.bf16.msra.mxu0 0
        %646 = vmatpush.bf16.msra.mxu0 0
        %647 = vmatpush.bf16.msra.mxu0 0
        %648 = vmatpush.bf16.msra.mxu0 0
        %649 = vmatpush.bf16.msra.mxu0 %v640
        %650 = vmatmul.bf16.gmra.mxu0 %v637
        %v651 = vpop.f32.mrf.mxu0
        %v652 = vadd.f32 0.0, %v651
        %v653 = vpop.f32.mrf.mxu0
        %654 = vdwg.mxu0
        %655 = vrot.lane.b32.xlu0 %v517, 64
        %v656 = vpop.permute.xlu0 %655
        %v658 = vsel %vm450, %v590, 0
        %v661 = vsel %vm596, %v656, 0
        %663 = vmatpush.bf16.msra.mxu0 0
        %664 = vmatpush.bf16.msra.mxu0 0
        %665 = vmatpush.bf16.msra.mxu0 0
        %666 = vmatpush.bf16.msra.mxu0 0
        %667 = vmatpush.bf16.msra.mxu0 0
        %668 = vmatpush.bf16.msra.mxu0 0
        %669 = vmatpush.bf16.msra.mxu0 0
        %670 = vmatpush.bf16.msra.mxu0 %v661
        %671 = vmatmul.bf16.gmra.mxu0 %v658
        %v672 = vpop.f32.mrf.mxu0
        %v673 = vadd.f32 0.0, %v672
        %v674 = vpop.f32.mrf.mxu0
        %675 = vdwg.mxu0
        %677 = vrot.lane.b32.xlu0 %v631, 8
        %v678 = vpop.permute.xlu0 %677
        %681 = vrot.lane.b32.xlu0 %v652, 16
        %v682 = vpop.permute.xlu0 %681
        %685 = vrot.lane.b32.xlu0 %v673, 24
        %v686 = vpop.permute.xlu0 %685
        %v688 = vsel %vm450, %v610, %v678
        %vm689 = vcmask 130048
        %v690 = vsel %vm689, %v688, %v682
        %vm691 = vcmask 195584
        %v692 = vsel %vm691, %v690, %v686
        %v693 = vpack.c.bf16 %v692, %v692
        %v695 = vperm.slane %v404, 0
        %v701 = vunpack.c.l.b16 %v400
        %v702 = vunpack.c.l.b16 %v401
        %v703 = vunpack.c.l.b16 %v402
        %v704 = vunpack.c.l.b16 %v403
        %v705 = vpack.c.b16 %v702, %v701
        %v706 = vpack.c.b16 %v704, %v703
        %v710 = vsel %vm421, %v693, 0
        %712 = vmatpush.bf16.msra.mxu0 0
        %713 = vmatpush.bf16.msra.mxu0 0
        %714 = vmatpush.bf16.msra.mxu0 0
        %715 = vmatpush.bf16.msra.mxu0 0
        %716 = vmatpush.bf16.msra.mxu0 0
        %717 = vmatpush.bf16.msra.mxu0 0
        %718 = vmatpush.bf16.msra.mxu0 %v706
        %719 = vmatpush.bf16.msra.mxu0 %v705
        %720 = vmatmul.bf16.gmra.mxu0 %v710
        %v721 = vpop.f32.mrf.mxu0
        %v722 = vadd.f32 %v695, %v721
        %v723 = vpop.f32.mrf.mxu0
        %724 = vdwg.mxu0
        %v725 = vadd.f32 %v394, %v722
        %v726 = vld [vmem:[%s6] sm:$0x1]
        %v727 = vld [vmem:[%s7] sm:$0x1]
        %v728 = vsel %vm421, %v725, 0.0
        %729 = vadd.xlane.f32.xlu0 %v728
        %v730 = vpop.xlane.xlu0 %729
        %v731 = vrcp.pop 32.0
        %v732 = vmul.f32 32.0, %v731
        %v733 = vsub.f32 1.0, %v732
        %v734 = vmul.f32 %v731, %v733
        %v735 = vadd.f32 %v731, %v734
        %vm736 = vweird.f32 %v731
        %v737 = vsel %vm736, %v731, %v735
        %v738 = vmul.f32 %v730, %v737
        %v739 = vsub.f32 %v725, %v738
        %v740 = vmul.f32 %v739, %v739
        %v741 = vsel %vm421, %v740, 0.0
        %742 = vadd.xlane.f32.xlu0 %v741
        %v743 = vpop.xlane.xlu0 %742
        %v744 = vmul.f32 %v743, %v737
        %v745 = vadd.f32 %v744, 1e-05
        %v746 = vrsqrt.pop %v745
        %v747 = vmul.f32 %v746, %v745
        %v748 = vmul.f32 %v747, %v746
        %v749 = vmul.f32 0.5, %v748
        %v750 = vsub.f32 1.5, %v749
        %v751 = vmul.f32 %v746, %v750
        %vm752 = vweird.f32 %v745
        %vm753 = vweird.f32 %v746
        %vm754 = vmor %vm752, %vm753
        %v755 = vsel %vm754, %v746, %v751
        %v756 = vmul.f32 %v739, %v755
        %v758 = vperm.slane %v726, 0
        %v760 = vmul.f32 %v756, %v758
        %v762 = vperm.slane %v727, 0
        %v764 = vadd.f32 %v760, %v762
        %765 = vst.msk [vmem:[%s384] sm:$0xff] %vm421, %v764
        %v766 = vld [vmem:[%s5] sm:$0xff]
        %v767 = vld [vmem:[%s5 + $0x8] sm:$0xff]
        %v768 = vld [vmem:[%s5 + $0x10] sm:$0xff]
        %v769 = vld [vmem:[%s5 + $0x18] sm:$0xff]
        %v771 = vsel %vm421, %v764, 0
        %773 = vmatpush.msra.mxu0 0.0
        %774 = vmatpush.msra.mxu0 0.0
        %775 = vmatpush.msra.mxu0 0.0
        %776 = vmatpush.msra.mxu0 0.0
        %777 = vmatpush.msra.mxu0 0.0
        %778 = vmatpush.msra.mxu0 0.0
        %779 = vmatpush.msra.mxu0 0.0
        %780 = vmatpush.msra.mxu0 0.0
        %781 = vmatpush.msra.mxu0 0.0
        %782 = vmatpush.msra.mxu0 0.0
        %783 = vmatpush.msra.mxu0 0.0
        %784 = vmatpush.msra.mxu0 0.0
        %785 = vmatpush.msra.mxu0 %v769
        %786 = vmatpush.msra.mxu0 %v768
        %787 = vmatpush.msra.mxu0 %v767
        %788 = vmatpush.msra.mxu0 %v766
        %789 = vmatmul.f32.gmra.mxu0 %v771
        %v790 = vpop.f32.mrf.mxu0
        %v791 = vadd.f32 0.0, %v790
        %792 = vdwg.mxu0
        %vm793 = vcmask 31744
        %v794 = vsel %vm793, %v791, -inf
        %795 = vmax.xlane.f32.xlu0 %v794
        %v796 = vpop.xlane.xlu0 %795
        %v797 = vsub.f32 %v791, %v796
        %v798 = vmul.f32 %v797, 1.442695
        %v799 = vpow.pop %v798
        %v800 = vsel %vm793, %v799, 0.0
        %801 = vadd.xlane.f32.xlu0 %v800
        %v802 = vpop.xlane.xlu0 %801
        %v803 = vrcp.pop %v802
        %v804 = vmul.f32 %v799, %v803
        %v805 = vlaneseq
        %v806 = vand.u32 %v805, 127
        %v807 = vsel %vm793, %v804, -inf
        %808 = vmax.xlane.f32.xlu0 %v807
        %v809 = vpop.xlane.xlu0 %808
        %vm810 = vcmp.eq.f32.partialorder %v804, %v809
        %v811 = vsel %vm810, %v806, 4
        %v812 = vsel %vm793, %v811, 2147483647
        %v813 = vand.u32 %v812, 65535
        %v814 = vshra.s32 %v812, 16
        %v815 = vcvt.s32.f32 %v813
        %v816 = vcvt.s32.f32 %v814
        %817 = vmin.xlane.f32.xlu0 %v816
        %v818 = vpop.xlane.xlu0 %817
        %vm819 = vcmp.eq.f32.partialorder %v816, %v818
        %v820 = vsel %vm819, %v815, inf
        %821 = vmin.xlane.f32.xlu0 %v820
        %v822 = vpop.xlane.xlu0 %821
        %v823 = vcvt.f32.s32 %v822
        %v824 = vcvt.f32.s32 %v818
        %v825 = vshll.u32 %v824, 16
        %v826 = vadd.s32 %v825, %v823
        %vm827 = vcmp.eq.s32.totalorder %v806, %v826
        %v828 = vsel %vm827, 1, 0
        %v829 = vcvt.s32.f32 %v828
        %v830 = vadd.f32 %v829, 0.0
        %vm831 = vcmp.gt.f32.partialorder %v829, 0.0
        %v832 = vsel %vm831, -inf, %v804
        %v833 = vsel %vm793, %v832, -inf
        %834 = vmax.xlane.f32.xlu0 %v833
        %v835 = vpop.xlane.xlu0 %834
        %vm836 = vcmp.eq.f32.partialorder %v832, %v835
        %v837 = vsel %vm836, %v806, 4
        %v838 = vsel %vm793, %v837, 2147483647
        %v839 = vand.u32 %v838, 65535
        %v840 = vshra.s32 %v838, 16
        %v841 = vcvt.s32.f32 %v839
        %v842 = vcvt.s32.f32 %v840
        %843 = vmin.xlane.f32.xlu0 %v842
        %v844 = vpop.xlane.xlu0 %843
        %vm845 = vcmp.eq.f32.partialorder %v842, %v844
        %v846 = vsel %vm845, %v841, inf
        %847 = vmin.xlane.f32.xlu0 %v846
        %v848 = vpop.xlane.xlu0 %847
        %v849 = vcvt.f32.s32 %v848
        %v850 = vcvt.f32.s32 %v844
        %v851 = vshll.u32 %v850, 16
        %v852 = vadd.s32 %v851, %v849
        %vm853 = vcmp.eq.s32.totalorder %v806, %v852
        %v854 = vsel %vm853, 1, 0
        %v855 = vcvt.s32.f32 %v854
        %v856 = vadd.f32 %v830, %v855
        %v857 = vmul.f32 %v804, %v856
        %v858 = vsel %vm793, %v857, 0.0
        %859 = vadd.xlane.f32.xlu0 %v858
        %v860 = vpop.xlane.xlu0 %859
        %v861 = vrcp.pop %v860
        %v862 = vmul.f32 %v857, %v861
        %863 = vst.msk [vmem:[%s388] sm:$0xff] %vm793, %v862
        %v864 = vsel %vm793, %v856, 0.0
        %v865 = vrot.slane %v864, 4
        %v866 = vadd.f32 %v864, %v865
        %v867 = vrot.slane %v866, 2
        %v868 = vadd.f32 %v866, %v867
        %v869 = vrot.slane %v868, 1
        %v870 = vadd.f32 %v868, %v869
        %v871 = vsel %vm793, %v804, 0.0
        %v872 = vrot.slane %v871, 4
        %v873 = vadd.f32 %v871, %v872
        %v874 = vrot.slane %v873, 2
        %v875 = vadd.f32 %v873, %v874
        %v876 = vrot.slane %v875, 1
        %v877 = vadd.f32 %v875, %v876
        %v878 = vlog2.pop %v802
        %v879 = vmul.f32 %v878, 0.6931472
        %v880 = vadd.f32 %v796, %v879
        %v881 = vmul.f32 %v880, %v880
        %v882 = vrot.slane %v881, 4
        %v883 = vadd.f32 %v881, %v882
        %v884 = vrot.slane %v883, 2
        %v885 = vadd.f32 %v883, %v884
        %v886 = vrot.slane %v885, 1
        %v887 = vadd.f32 %v885, %v886
        %v888 = vsel %vm793, %v870, 0.0
        %v889 = vsel %vm793, %v877, 0.0
        %vm890 = vcmask 7168
        %v891 = vsel %vm890, %v887, 0.0
        %v893 = vrot.slane %v889, 7
        %v896 = vrot.slane %v891, 6
        %vm898 = vcmask 1040384
        %v899 = vsel %vm898, %v888, %v893
        %vm900 = vcmask 1041408
        %v901 = vsel %vm900, %v899, %v896
        %902 = vst [vmem:[%s392] sm:$0x7] %v901
        %p903 = scmp.lt.s32.totalorder %s23, 1
        %s904 = scalar_select %p903, %s23, 1
        %s905 = smul.addr %s904, 8
        %s906 = scalar_lea.vmem %s8, %s905
        %p907 = scmp.lt.s32.totalorder %s23, 1
        %s908 = scalar_select %p907, %s23, 1
        %s909 = smul.addr %s908, 8
        %s910 = scalar_lea.vmem %s9, %s909
        %p911 = scmp.lt.s32.totalorder %s23, 1
        %s912 = scalar_select %p911, %s23, 1
        %s913 = smul.addr %s912, 4
        %s914 = scalar_lea.vmem %s10, %s913
        // Predicated region
        $region57: #{moae_transformer_block.2} parent=51 // pred_check
          %p915 = pneg %p214
        $region58: #{moae_transformer_block.2} parent=51 // pred_check_branch
          %917 = sbr.rel (%p915) target = $region60
        $region59: #{moae_transformer_block.2} parent=51 // pred_region
          _
        $region60: #{moae_transformer_block.2} parent=51 // pred_fallthru
          _
        // Predicated region
        $region61: #{moae_transformer_block.2} parent=51 // pred_check
          %p918 = pneg %p240
        $region62: #{moae_transformer_block.2} parent=51 // pred_check_branch
          %920 = sbr.rel (%p918) target = $region64
        $region63: #{moae_transformer_block.2} parent=51 // pred_region
          _
        $region64: #{moae_transformer_block.2} parent=51 // pred_fallthru
          _
        // Predicated region
        $region65: #{moae_transformer_block.2} parent=51 // pred_check
          %p921 = pneg %p266
        $region66: #{moae_transformer_block.2} parent=51 // pred_check_branch
          %923 = sbr.rel (%p921) target = $region68
        $region67: #{moae_transformer_block.2} parent=51 // pred_region
          _
        $region68: #{moae_transformer_block.2} parent=51 // pred_fallthru
          _
      $region52: #{moae_transformer_block.2} parent=5 // pred_fallthru
        _
      %p924 = scmp.le.s32.totalorder 2, %s18
      // Predicated region
      $region69: #{moae_transformer_block.2} parent=5 // pred_check
        %p925 = pneg %p924
      $region70: #{moae_transformer_block.2} parent=5 // pred_check_branch
        %927 = sbr.rel (%p925) target = $region72
      $region71: #{moae_transformer_block.2} parent=5 // pred_region
        %s928 = ssub.s32 %s18, 2
        // Predicated region
        $region73: #{moae_transformer_block.2} parent=71 // pred_check
          %p929 = pneg %p220
        $region74: #{moae_transformer_block.2} parent=71 // pred_check_branch
          %931 = sbr.rel (%p929) target = $region76
        $region75: #{moae_transformer_block.2} parent=71 // pred_region
          %p932 = scmp.lt.s32.totalorder %s24, 1
          %s933 = scalar_select %p932, %s24, 1
          %s934 = smul.addr %s933, 8
          %s935 = scalar_lea.vmem %s8, %s934
        $region76: #{moae_transformer_block.2} parent=71 // pred_fallthru
          _
        // Predicated region
        $region77: #{moae_transformer_block.2} parent=71 // pred_check
          %p936 = pneg %p246
        $region78: #{moae_transformer_block.2} parent=71 // pred_check_branch
          %938 = sbr.rel (%p936) target = $region80
        $region79: #{moae_transformer_block.2} parent=71 // pred_region
          %p939 = scmp.lt.s32.totalorder %s24, 1
          %s940 = scalar_select %p939, %s24, 1
          %s941 = smul.addr %s940, 8
          %s942 = scalar_lea.vmem %s9, %s941
        $region80: #{moae_transformer_block.2} parent=71 // pred_fallthru
          _
        // Predicated region
        $region81: #{moae_transformer_block.2} parent=71 // pred_check
          %p943 = pneg %p272
        $region82: #{moae_transformer_block.2} parent=71 // pred_check_branch
          %945 = sbr.rel (%p943) target = $region84
        $region83: #{moae_transformer_block.2} parent=71 // pred_region
          %p946 = scmp.lt.s32.totalorder %s24, 1
          %s947 = scalar_select %p946, %s24, 1
          %s948 = smul.addr %s947, 4
          %s949 = scalar_lea.vmem %s10, %s948
        $region84: #{moae_transformer_block.2} parent=71 // pred_fallthru
          _
      $region72: #{moae_transformer_block.2} parent=5 // pred_fallthru
        _
    $region6: #{moae_transformer_block.2} parent=1 // loop_footer
      %s22 = sadd.s32 1, %s18
    $region7: #{moae_transformer_block.2} parent=1 // loop_footer_branch
      %17 = sbr.rel target = $region3
    $region8: #{moae_transformer_block.2} parent=1 // loop_exit
      _
    %950 = vsyncpa [#allocation3], 1
    %s951 = scalar_lea.sflag [#allocation3], 1
    %952 = vsyncpa %s951, 1

</llo_original>
